<compile_context>
chip_gen: v5e
topology: v5e:2x2
jax: 0.10.0
libtpu: 0.0.40
codegen_flags: <defaults>
</compile_context>

<pallas_src>
import functools

import numpy as np
import jax
import jax.numpy as jnp
from jax.experimental import pallas as pl
from jax.experimental.pallas import tpu as pltpu  # noqa: F401


# ------------------------------ fused Pallas kernel ------------------------------

def _fused_updater_kernel(*refs, n_layers, rnn_in, ln_inputs):
    """LayerNorm -> [matmul+bias+ReLU] * n_layers -> tanh RNN cell (all in VMEM).

    refs = [x, h, (w_i, b_i) * n_layers, rnn_w, rnn_b, out]
    Matmul weights are bf16; activations are cast to bf16 right before each dot
    and accumulated in f32 on the MXU; all elementwise math is f32.
    """
    x_ref = refs[0]
    h_ref = refs[1]
    layer_refs = [(refs[2 + 2 * i], refs[3 + 2 * i]) for i in range(n_layers)]
    rnn_w_ref = refs[2 + 2 * n_layers]
    rnn_b_ref = refs[3 + 2 * n_layers]
    out_ref = refs[-1]

    x = x_ref[...]                                          # (M, C*H*W) f32

    if ln_inputs:
        # nn.LayerNorm(image_shape, elementwise_affine=False), eps=1e-5.
        # Single-pass statistics: one reduction sweep instead of two.
        mean = jnp.mean(x, axis=-1, keepdims=True)
        mean_sq = jnp.mean(x * x, axis=-1, keepdims=True)
        var = jnp.maximum(mean_sq - mean * mean, 0.0)
        x = (x - mean) * jax.lax.rsqrt(var + 1e-5)

    # Encoder: conv layers (lowered at init to dense matmuls over the
    # NCHW-flattened activation) followed by the MLP layers — same fused
    # matmul + bias + ReLU shape for all of them.
    a = x
    for w_ref, b_ref in layer_refs:
        y = jnp.dot(a.astype(jnp.bfloat16), w_ref[...],
                    preferred_element_type=jnp.float32)
        a = jnp.maximum(y + b_ref[...], 0.0)

    # Vanilla tanh RNN cell with a single combined weight [Wx; Wh].
    state = h_ref.shape[-1]
    h = h_ref[...]
    y = jnp.dot(a.astype(jnp.bfloat16), rnn_w_ref[pl.ds(0, rnn_in), :],
                preferred_element_type=jnp.float32)
    y = y + jnp.dot(h.astype(jnp.bfloat16), rnn_w_ref[pl.ds(rnn_in, state), :],
                    preferred_element_type=jnp.float32)
    out_ref[...] = jnp.tanh(y + rnn_b_ref[...])


def _full_spec(shape):
    # Whole-array block (grid=()): everything is VMEM-resident for the single call.
    return pl.BlockSpec(shape, lambda: (0,) * len(shape))


# ---------------------- conv -> dense lowering (init time only) -------------------

def conv_as_dense(weight, bias, in_chw, stride):
    """Lower PyTorch Conv2d(Cin->Cout, k, stride, padding=k//2) to an equivalent
    dense matrix acting on the NCHW-flattened activation:

        y_flat(NCHW order) = x_flat(NCHW order) @ M + b_flat

    Exact same math as the conv; done once at init so the kernel sees only a
    lane-dense matmul.  (Only sensible at small spatial sizes like 16x16.)
    """
    weight = np.asarray(weight, np.float32)
    bias = np.asarray(bias, np.float32)
    cout, cin, kh, kw = weight.shape
    c, hgt, wid = in_chw
    assert c == cin
    p = kh // 2
    ho_n = (hgt + 2 * p - kh) // stride + 1
    wo_n = (wid + 2 * p - kw) // stride + 1

    mat = np.zeros((cin * hgt * wid, cout * ho_n * wo_n), np.float32)
    ci_idx = np.arange(cin)
    co_idx = np.arange(cout)
    for i in range(kh):
        for j in range(kw):
            tap = weight[:, :, i, j].T                     # (cin, cout)
            for ho in range(ho_n):
                hi = stride * ho + i - p
                if hi < 0 or hi >= hgt:
                    continue
                for wo in range(wo_n):
                    wi = stride * wo + j - p
                    if wi < 0 or wi >= wid:
                        continue
                    rows = (ci_idx * hgt + hi) * wid + wi   # input flat (c,h,w)
                    cols = (co_idx * ho_n + ho) * wo_n + wo  # output flat (c,h,w)
                    mat[np.ix_(rows, cols)] += tap
    b_flat = np.repeat(bias, ho_n * wo_n)                   # NCHW flatten order
    return mat, b_flat, (cout, ho_n, wo_n)


# ----------------------------------- parameters -----------------------------------

def init_updater_params(key, config):
    c_list = config["dec_channel_list_rev"]
    k_list = config["dec_kernel_list_rev"]
    s_list = config["dec_stride_list_rev"]
    h_list = config["dec_hidden_list_rev"]
    chw = tuple(config["image_shape"])

    ws, bs = [], []

    # Conv layers -> dense matmul weights (bf16) + flat biases (f32).
    for c_out, k, s in zip(c_list, k_list, s_list):
        key, kw_, kb_ = jax.random.split(key, 3)
        fan_in = chw[0] * k * k
        w_conv = (jax.random.normal(kw_, (c_out, chw[0], k, k), jnp.float32)
                  / jnp.sqrt(fan_in))
        b_conv = jax.random.normal(kb_, (c_out,), jnp.float32) * 0.01
        dense, b_flat, chw = conv_as_dense(w_conv, b_conv, chw, s)
        ws.append(jnp.asarray(dense, jnp.bfloat16))
        bs.append(jnp.asarray(b_flat, jnp.float32).reshape(1, -1))

    # MLP layers.
    feat = chw[0] * chw[1] * chw[2]
    for hdim in h_list:
        key, kw_, kb_ = jax.random.split(key, 3)
        wfc = jax.random.normal(kw_, (feat, hdim), jnp.float32) / jnp.sqrt(feat)
        bfc = jax.random.normal(kb_, (hdim,), jnp.float32) * 0.01
        ws.append(wfc.astype(jnp.bfloat16))
        bs.append(bfc.reshape(1, -1))
        feat = hdim

    # RNN cell: combined weight [Wx; Wh] (single operand / single DMA) + bias.
    state = config["state_size"]
    key, k1, k2, k3 = jax.random.split(key, 4)
    wx = jax.random.normal(k1, (feat, state), jnp.float32) / jnp.sqrt(feat)
    wh = jax.random.normal(k2, (state, state), jnp.float32) / jnp.sqrt(state)
    rb = jax.random.normal(k3, (state,), jnp.float32) * 0.01

    params = {
        "ws": ws,
        "bs": bs,
        "rnn_w": jnp.concatenate([wx, wh], axis=0).astype(jnp.bfloat16),
        "rnn_b": rb.reshape(1, -1),
    }
    static = {
        "n_layers": len(ws),
        "rnn_in": feat,
        "state_size": state,
        "ln_inputs": bool(config["ln_inputs"]),
    }
    return params, static


# ------------------------------------ forward -------------------------------------

def make_updater_forward(static):
    n_layers = static["n_layers"]
    rnn_in = static["rnn_in"]
    state = static["state_size"]
    ln_inputs = static["ln_inputs"]

    kernel = functools.partial(_fused_updater_kernel, n_layers=n_layers,
                               rnn_in=rnn_in, ln_inputs=ln_inputs)

    @jax.jit
    def forward(params, inputs, states):
        # inputs: (B, K, C, H, W) -> (B*K, C*H*W), NCHW flatten.  This matches both
        # the LayerNorm normalized_shape and the dense conv matrices built at init,
        # so there is zero per-call relayout glue.
        x = inputs.reshape((-1,) + inputs.shape[2:]).astype(jnp.float32)
        m = x.shape[0]
        x2d = x.reshape(m, -1)
        h = states.astype(jnp.float32)

        args = [x2d, h]
        for w, b in zip(params["ws"], params["bs"]):
            args += [w, b]
        args += [params["rnn_w"], params["rnn_b"]]

        # Advisory cost estimate so XLA schedules the (single) custom call sensibly.
        flops = 2 * m * sum(int(w.shape[0]) * int(w.shape[1]) for w in params["ws"])
        flops += 2 * m * int(params["rnn_w"].shape[0]) * int(params["rnn_w"].shape[1])
        bytes_accessed = sum(int(np.prod(a.shape)) * a.dtype.itemsize for a in args)
        bytes_accessed += m * state * 4
        cost = pl.CostEstimate(flops=flops, transcendentals=m * (1 + state),
                               bytes_accessed=bytes_accessed)

        out = pl.pallas_call(
            kernel,
            out_shape=jax.ShapeDtypeStruct((m, state), jnp.float32),
            in_specs=[_full_spec(a.shape) for a in args],
            out_specs=_full_spec((m, state)),
            cost_estimate=cost,
        )(*args)
        # Reconstructed tanh RNNCell: outputs == new hidden states.
        return out, out

    return forward


# -------------------------------------- main --------------------------------------

if __name__ == "__main__":
    config = {
        "state_size": 32,
        "ln_inputs": True,
        "image_shape": (4, 16, 16),          # (C, H, W)
        "dec_channel_list_rev": [8, 16],
        "dec_kernel_list_rev": [3, 3],
        "dec_stride_list_rev": [2, 2],
        "dec_hidden_list_rev": [32],
    }

    key = jax.random.PRNGKey(0)
    key, k_in, k_st, k_p = jax.random.split(key, 4)

    B, K = 2, 3
    C, H, W = config["image_shape"]
    inputs = jax.random.normal(k_in, (B, K, C, H, W), jnp.float32)
    states = jax.random.normal(k_st, (B * K, config["state_size"]), jnp.float32)

    params, static = init_updater_params(k_p, config)
    forward = make_updater_forward(static)

    outputs, new_states = forward(params, inputs, states)
    jax.block_until_ready((outputs, new_states))

    assert outputs.shape == (B * K, config["state_size"])
    assert new_states.shape == (B * K, config["state_size"])
    print("KERNEL_OK")
</pallas_src>

<mosaic_0001>
module attributes {stable_mosaic.version = 11 : i64} {
  func.func @_fused_updater_kernel(%arg0: memref<6x1024xf32, #tpu.memory_space<vmem>>, %arg1: memref<6x32xf32, #tpu.memory_space<vmem>>, %arg2: memref<1024x512xbf16, #tpu.memory_space<vmem>>, %arg3: memref<1x512xf32, #tpu.memory_space<vmem>>, %arg4: memref<512x256xbf16, #tpu.memory_space<vmem>>, %arg5: memref<1x256xf32, #tpu.memory_space<vmem>>, %arg6: memref<256x32xbf16, #tpu.memory_space<vmem>>, %arg7: memref<1x32xf32, #tpu.memory_space<vmem>>, %arg8: memref<64x32xbf16, #tpu.memory_space<vmem>>, %arg9: memref<1x32xf32, #tpu.memory_space<vmem>>, %arg10: memref<6x32xf32, #tpu.memory_space<vmem>>) attributes {dimension_semantics = [], scalar_prefetch = 0 : i64, scratch_operands = 0 : i64, tpu.core_type = #tpu.core_type<tc>} {
    %c0 = arith.constant 0 : index
    %c0_0 = arith.constant 0 : index
    %0 = vector.load %arg0[%c0, %c0_0] : memref<6x1024xf32, #tpu.memory_space<vmem>>, vector<6x1024xf32>
    %cst = arith.constant dense<0.000000e+00> : vector<6xf32>
    %1 = vector.multi_reduction <add>, %0, %cst [1] : vector<6x1024xf32> to vector<6xf32>
    %2 = vector.shape_cast %1 : vector<6xf32> to vector<6x1xf32>
    %cst_1 = arith.constant 1.024000e+03 : f32
    %3 = vector.broadcast %cst_1 : f32 to vector<6x1xf32>
    %4 = arith.divf %2, %3 : vector<6x1xf32>
    %5 = arith.mulf %0, %0 : vector<6x1024xf32>
    %cst_2 = arith.constant dense<0.000000e+00> : vector<6xf32>
    %6 = vector.multi_reduction <add>, %5, %cst_2 [1] : vector<6x1024xf32> to vector<6xf32>
    %7 = vector.shape_cast %6 : vector<6xf32> to vector<6x1xf32>
    %cst_3 = arith.constant 1.024000e+03 : f32
    %8 = vector.broadcast %cst_3 : f32 to vector<6x1xf32>
    %9 = arith.divf %7, %8 : vector<6x1xf32>
    %10 = arith.mulf %4, %4 : vector<6x1xf32>
    %11 = arith.subf %9, %10 : vector<6x1xf32>
    %cst_4 = arith.constant 0.000000e+00 : f32
    %12 = vector.broadcast %cst_4 : f32 to vector<6x1xf32>
    %13 = arith.maximumf %11, %12 : vector<6x1xf32>
    %14 = vector.broadcast %4 : vector<6x1xf32> to vector<6x1024xf32>
    %15 = arith.subf %0, %14 : vector<6x1024xf32>
    %cst_5 = arith.constant 9.99999974E-6 : f32
    %16 = vector.broadcast %cst_5 : f32 to vector<6x1xf32>
    %17 = arith.addf %13, %16 : vector<6x1xf32>
    %18 = math.rsqrt %17 : vector<6x1xf32>
    %19 = vector.broadcast %18 : vector<6x1xf32> to vector<6x1024xf32>
    %20 = arith.mulf %15, %19 : vector<6x1024xf32>
    %21 = arith.truncf %20 : vector<6x1024xf32> to vector<6x1024xbf16>
    %c0_6 = arith.constant 0 : index
    %c0_7 = arith.constant 0 : index
    %22 = vector.load %arg2[%c0_6, %c0_7] : memref<1024x512xbf16, #tpu.memory_space<vmem>>, vector<1024x512xbf16>
    %cst_8 = arith.constant dense<0.000000e+00> : vector<6x512xf32>
    %23 = tpu.matmul %21, %22, %cst_8 {dimension_numbers = #tpu.dot_dimension_numbers<[1], [0], [0], [1], [0, 0, 1, 1], [], []>} : vector<6x1024xbf16>, vector<1024x512xbf16>, vector<6x512xf32> -> vector<6x512xf32>
    %c0_9 = arith.constant 0 : index
    %c0_10 = arith.constant 0 : index
    %24 = vector.load %arg3[%c0_9, %c0_10] : memref<1x512xf32, #tpu.memory_space<vmem>>, vector<1x512xf32>
    %25 = vector.broadcast %24 : vector<1x512xf32> to vector<6x512xf32>
    %26 = arith.addf %23, %25 : vector<6x512xf32>
    %cst_11 = arith.constant 0.000000e+00 : f32
    %27 = vector.broadcast %cst_11 : f32 to vector<6x512xf32>
    %28 = arith.maximumf %26, %27 : vector<6x512xf32>
    %29 = arith.truncf %28 : vector<6x512xf32> to vector<6x512xbf16>
    %c0_12 = arith.constant 0 : index
    %c0_13 = arith.constant 0 : index
    %30 = vector.load %arg4[%c0_12, %c0_13] : memref<512x256xbf16, #tpu.memory_space<vmem>>, vector<512x256xbf16>
    %cst_14 = arith.constant dense<0.000000e+00> : vector<6x256xf32>
    %31 = tpu.matmul %29, %30, %cst_14 {dimension_numbers = #tpu.dot_dimension_numbers<[1], [0], [0], [1], [0, 0, 1, 1], [], []>} : vector<6x512xbf16>, vector<512x256xbf16>, vector<6x256xf32> -> vector<6x256xf32>
    %c0_15 = arith.constant 0 : index
    %c0_16 = arith.constant 0 : index
    %32 = vector.load %arg5[%c0_15, %c0_16] : memref<1x256xf32, #tpu.memory_space<vmem>>, vector<1x256xf32>
    %33 = vector.broadcast %32 : vector<1x256xf32> to vector<6x256xf32>
    %34 = arith.addf %31, %33 : vector<6x256xf32>
    %cst_17 = arith.constant 0.000000e+00 : f32
    %35 = vector.broadcast %cst_17 : f32 to vector<6x256xf32>
    %36 = arith.maximumf %34, %35 : vector<6x256xf32>
    %37 = arith.truncf %36 : vector<6x256xf32> to vector<6x256xbf16>
    %c0_18 = arith.constant 0 : index
    %c0_19 = arith.constant 0 : index
    %38 = vector.load %arg6[%c0_18, %c0_19] : memref<256x32xbf16, #tpu.memory_space<vmem>>, vector<256x32xbf16>
    %cst_20 = arith.constant dense<0.000000e+00> : vector<6x32xf32>
    %39 = tpu.matmul %37, %38, %cst_20 {dimension_numbers = #tpu.dot_dimension_numbers<[1], [0], [0], [1], [0, 0, 1, 1], [], []>} : vector<6x256xbf16>, vector<256x32xbf16>, vector<6x32xf32> -> vector<6x32xf32>
    %c0_21 = arith.constant 0 : index
    %c0_22 = arith.constant 0 : index
    %40 = vector.load %arg7[%c0_21, %c0_22] : memref<1x32xf32, #tpu.memory_space<vmem>>, vector<1x32xf32>
    %41 = vector.broadcast %40 : vector<1x32xf32> to vector<6x32xf32>
    %42 = arith.addf %39, %41 : vector<6x32xf32>
    %cst_23 = arith.constant 0.000000e+00 : f32
    %43 = vector.broadcast %cst_23 : f32 to vector<6x32xf32>
    %44 = arith.maximumf %42, %43 : vector<6x32xf32>
    %c0_24 = arith.constant 0 : index
    %c0_25 = arith.constant 0 : index
    %45 = vector.load %arg1[%c0_24, %c0_25] : memref<6x32xf32, #tpu.memory_space<vmem>>, vector<6x32xf32>
    %46 = arith.truncf %44 : vector<6x32xf32> to vector<6x32xbf16>
    %c0_26 = arith.constant 0 : index
    %c0_27 = arith.constant 0 : index
    %47 = vector.load %arg8[%c0_26, %c0_27] : memref<64x32xbf16, #tpu.memory_space<vmem>>, vector<32x32xbf16>
    %cst_28 = arith.constant dense<0.000000e+00> : vector<6x32xf32>
    %48 = tpu.matmul %46, %47, %cst_28 {dimension_numbers = #tpu.dot_dimension_numbers<[1], [0], [0], [1], [0, 0, 1, 1], [], []>} : vector<6x32xbf16>, vector<32x32xbf16>, vector<6x32xf32> -> vector<6x32xf32>
    %49 = arith.truncf %45 : vector<6x32xf32> to vector<6x32xbf16>
    %c32 = arith.constant 32 : index
    %c0_29 = arith.constant 0 : index
    %50 = vector.load %arg8[%c32, %c0_29] : memref<64x32xbf16, #tpu.memory_space<vmem>>, vector<32x32xbf16>
    %cst_30 = arith.constant dense<0.000000e+00> : vector<6x32xf32>
    %51 = tpu.matmul %49, %50, %cst_30 {dimension_numbers = #tpu.dot_dimension_numbers<[1], [0], [0], [1], [0, 0, 1, 1], [], []>} : vector<6x32xbf16>, vector<32x32xbf16>, vector<6x32xf32> -> vector<6x32xf32>
    %52 = arith.addf %48, %51 : vector<6x32xf32>
    %c0_31 = arith.constant 0 : index
    %c0_32 = arith.constant 0 : index
    %53 = vector.load %arg9[%c0_31, %c0_32] : memref<1x32xf32, #tpu.memory_space<vmem>>, vector<1x32xf32>
    %54 = vector.broadcast %53 : vector<1x32xf32> to vector<6x32xf32>
    %55 = arith.addf %52, %54 : vector<6x32xf32>
    %56 = math.tanh %55 : vector<6x32xf32>
    %c0_33 = arith.constant 0 : index
    %c0_34 = arith.constant 0 : index
    %57 = vector.load %arg10[%c0_33, %c0_34] : memref<6x32xf32, #tpu.memory_space<vmem>>, vector<6x32xf32>
    tpu.vector_store %arg10[%c0_33, %c0_34], %56 {strides = array<i32>} : memref<6x32xf32, #tpu.memory_space<vmem>>, vector<6x32xf32>,
    return
  }
}

</mosaic_0001>

<llo_original>
// kernel: forward.1
$region0: #{forward.1}
  #allocation0 [shape = 'u32[]', space=smem, size = 0x4, offset = 0x4, fixed_abs, tag = 'smem constant byte address 0x4 - core index']
  #allocation1 [shape = 'u32[72,128]{1,0:T(1,128)}', space=vmem, size = 0x9000, scoped, tag = 'internal scratch']
  %s0 = inlined_call_operand.vmem [shape: f32[6,1024], index: 0, kind: input, shape index: {}]
  %s1 = inlined_call_operand.vmem [shape: f32[6,32], index: 1, kind: input, shape index: {}]
  %s2 = inlined_call_operand.hbm [shape: bf16[1024,512], index: 2, kind: input, shape index: {}]
  %s3 = inlined_call_operand.vmem [shape: f32[1,512], index: 3, kind: input, shape index: {}]
  %s4 = inlined_call_operand.vmem [shape: bf16[512,256], index: 4, kind: input, shape index: {}]
  %s5 = inlined_call_operand.vmem [shape: f32[1,256], index: 5, kind: input, shape index: {}]
  %s6 = inlined_call_operand.vmem [shape: bf16[256,32], index: 6, kind: input, shape index: {}]
  %s7 = inlined_call_operand.vmem [shape: f32[1,32], index: 7, kind: input, shape index: {}]
  %s8 = inlined_call_operand.vmem [shape: bf16[64,32], index: 8, kind: input, shape index: {}]
  %s9 = inlined_call_operand.vmem [shape: f32[1,32], index: 9, kind: input, shape index: {}]
  %s10 = inlined_call_operand.vmem [shape: f32[6,32], index: 10, kind: output, shape index: {}]
  %s11 = sld [smem:[#allocation0]]
  $region54: #{forward.1} parent=0
    _
  %s13 = ssub.s32 1, %s11
  %s14 = scalar_select 0, %s13, %s11
  $region1: #{forward.1} parent=0
    #allocation2 [shape = 'u8[1048576]{0}', space=vmem, size = 0x100000, scoped, tag = 'input window, operand 2, single buffered']
    #allocation3 [shape = 's32[1]{0}', space=sflag, size = 0x4, scoped, tag = 'scoped memory for forward.1']
    %15 = vsyncpa [#allocation3], 0
    // Predicated region
    $region2: #{forward.1} parent=1 // pred_check
      _
    $region3: #{forward.1} parent=1 // pred_check_branch
      %17 = sbr.rel (0) target = $region5
    $region4: #{forward.1} parent=1 // pred_region
      _
    $region5: #{forward.1} parent=1 // pred_fallthru
      _
    // Predicated region
    $region6: #{forward.1} parent=1 // pred_check
      _
    $region7: #{forward.1} parent=1 // pred_check_branch
      %19 = sbr.rel (0) target = $region9
    $region8: #{forward.1} parent=1 // pred_region
      _
    $region9: #{forward.1} parent=1 // pred_fallthru
      _
    // Predicated region
    $region10: #{forward.1} parent=1 // pred_check
      _
    $region11: #{forward.1} parent=1 // pred_check_branch
      %21 = sbr.rel (0) target = $region13
    $region12: #{forward.1} parent=1 // pred_region
      %23 = vsyncadd [#allocation3], 0
      %s24 = sshll.u32 %s2, 4
      %s25 = int_to_ptr.hbm [resolvable:$true] %s24
      %s26 = sshll.u32 [#allocation2], 4
      %s27 = int_to_ptr.vmem [resolvable:$true] %s26
      %32 = dma.hbm_to_vmem [thread:$0]  %s25, 32768, %s27, [#allocation3], 256, 256, 16
    $region13: #{forward.1} parent=1 // pred_fallthru
      _
    // Predicated region
    $region14: #{forward.1} parent=1 // pred_check
      _
    $region15: #{forward.1} parent=1 // pred_check_branch
      %34 = sbr.rel (0) target = $region17
    $region16: #{forward.1} parent=1 // pred_region
      _
    $region17: #{forward.1} parent=1 // pred_fallthru
      _
    // Predicated region
    $region18: #{forward.1} parent=1 // pred_check
      _
    $region19: #{forward.1} parent=1 // pred_check_branch
      %36 = sbr.rel (0) target = $region21
    $region20: #{forward.1} parent=1 // pred_region
      _
    $region21: #{forward.1} parent=1 // pred_fallthru
      _
    // Predicated region
    $region22: #{forward.1} parent=1 // pred_check
      _
    $region23: #{forward.1} parent=1 // pred_check_branch
      %38 = sbr.rel (0) target = $region25
    $region24: #{forward.1} parent=1 // pred_region
      _
    $region25: #{forward.1} parent=1 // pred_fallthru
      _
    // Predicated region
    $region26: #{forward.1} parent=1 // pred_check
      _
    $region27: #{forward.1} parent=1 // pred_check_branch
      %40 = sbr.rel (0) target = $region29
    $region28: #{forward.1} parent=1 // pred_region
      _
    $region29: #{forward.1} parent=1 // pred_fallthru
      _
    // Predicated region
    $region30: #{forward.1} parent=1 // pred_check
      _
    $region31: #{forward.1} parent=1 // pred_check_branch
      %42 = sbr.rel (0) target = $region33
    $region32: #{forward.1} parent=1 // pred_region
      _
    $region33: #{forward.1} parent=1 // pred_fallthru
      _
    // Predicated region
    $region34: #{forward.1} parent=1 // pred_check
      _
    $region35: #{forward.1} parent=1 // pred_check_branch
      %44 = sbr.rel (0) target = $region37
    $region36: #{forward.1} parent=1 // pred_region
      _
    $region37: #{forward.1} parent=1 // pred_fallthru
      _
    // Predicated region
    $region38: #{forward.1} parent=1 // pred_check
      _
    $region39: #{forward.1} parent=1 // pred_check_branch
      %46 = sbr.rel (0) target = $region41
    $region40: #{forward.1} parent=1 // pred_region
      _
    $region41: #{forward.1} parent=1 // pred_fallthru
      _
    // Predicated region
    $region42: #{forward.1} parent=1 // pred_check
      _
    $region43: #{forward.1} parent=1 // pred_check_branch
      %48 = sbr.rel (0) target = $region45
    $region44: #{forward.1} parent=1 // pred_region
      %50 = dma.done [#allocation3], 32768
    $region45: #{forward.1} parent=1 // pred_fallthru
      _
    %v52 = vld [vmem:[%s0] sm:$0x3f]
    %v53 = vld [vmem:[%s0 + $0x8] sm:$0x3f]
    %v54 = vld [vmem:[%s0 + $0x10] sm:$0x3f]
    %v55 = vld [vmem:[%s0 + $0x18] sm:$0x3f]
    %v56 = vld [vmem:[%s0 + $0x20] sm:$0x3f]
    %v57 = vld [vmem:[%s0 + $0x28] sm:$0x3f]
    %v58 = vld [vmem:[%s0 + $0x30] sm:$0x3f]
    %v59 = vld [vmem:[%s0 + $0x38] sm:$0x3f]
    %vm60 = vcmask 1045504
    %v61 = vsel %vm60, %v52, 0.0
    %v62 = vsel %vm60, %v53, 0.0
    %v63 = vadd.f32 %v61, %v62
    %v64 = vsel %vm60, %v54, 0.0
    %v65 = vadd.f32 %v63, %v64
    %v66 = vsel %vm60, %v55, 0.0
    %v67 = vadd.f32 %v65, %v66
    %v68 = vsel %vm60, %v56, 0.0
    %v69 = vadd.f32 %v67, %v68
    %v70 = vsel %vm60, %v57, 0.0
    %v71 = vadd.f32 %v69, %v70
    %v72 = vsel %vm60, %v58, 0.0
    %v73 = vadd.f32 %v71, %v72
    %v74 = vsel %vm60, %v59, 0.0
    %v75 = vadd.f32 %v73, %v74
    %76 = vadd.xlane.f32.xlu0 %v75
    %v77 = vpop.xlane.xlu0 %76
    %v78 = vrcp.pop 1024.0
    %v79 = vmul.f32 1024.0, %v78
    %v80 = vsub.f32 1.0, %v79
    %v81 = vmul.f32 %v78, %v80
    %v82 = vadd.f32 %v78, %v81
    %vm83 = vweird.f32 %v78
    %v84 = vsel %vm83, %v78, %v82
    %v85 = vmul.f32 %v77, %v84
    %v86 = vmul.f32 %v52, %v52
    %v87 = vmul.f32 %v53, %v53
    %v88 = vmul.f32 %v54, %v54
    %v89 = vmul.f32 %v55, %v55
    %v90 = vmul.f32 %v56, %v56
    %v91 = vmul.f32 %v57, %v57
    %v92 = vmul.f32 %v58, %v58
    %v93 = vmul.f32 %v59, %v59
    %v94 = vsel %vm60, %v86, 0.0
    %v95 = vsel %vm60, %v87, 0.0
    %v96 = vadd.f32 %v94, %v95
    %v97 = vsel %vm60, %v88, 0.0
    %v98 = vadd.f32 %v96, %v97
    %v99 = vsel %vm60, %v89, 0.0
    %v100 = vadd.f32 %v98, %v99
    %v101 = vsel %vm60, %v90, 0.0
    %v102 = vadd.f32 %v100, %v101
    %v103 = vsel %vm60, %v91, 0.0
    %v104 = vadd.f32 %v102, %v103
    %v105 = vsel %vm60, %v92, 0.0
    %v106 = vadd.f32 %v104, %v105
    %v107 = vsel %vm60, %v93, 0.0
    %v108 = vadd.f32 %v106, %v107
    %109 = vadd.xlane.f32.xlu0 %v108
    %v110 = vpop.xlane.xlu0 %109
    %v111 = vmul.f32 %v110, %v84
    %v112 = vmul.f32 %v85, %v85
    %v113 = vsub.f32 %v111, %v112
    %v114 = vmax.f32 %v113, 0.0
    %v115 = vsub.f32 %v52, %v85
    %v116 = vsub.f32 %v53, %v85
    %v117 = vsub.f32 %v54, %v85
    %v118 = vsub.f32 %v55, %v85
    %v119 = vsub.f32 %v56, %v85
    %v120 = vsub.f32 %v57, %v85
    %v121 = vsub.f32 %v58, %v85
    %v122 = vsub.f32 %v59, %v85
    %v123 = vadd.f32 %v114, 1e-05
    %v124 = vrsqrt.pop %v123
    %v125 = vmul.f32 %v124, %v123
    %v126 = vmul.f32 %v125, %v124
    %v127 = vmul.f32 0.5, %v126
    %v128 = vsub.f32 1.5, %v127
    %v129 = vmul.f32 %v124, %v128
    %vm130 = vweird.f32 %v123
    %vm131 = vweird.f32 %v124
    %vm132 = vmor %vm130, %vm131
    %v133 = vsel %vm132, %v124, %v129
    %v134 = vmul.f32 %v115, %v133
    %v135 = vmul.f32 %v116, %v133
    %v136 = vmul.f32 %v117, %v133
    %v137 = vmul.f32 %v118, %v133
    %v138 = vmul.f32 %v119, %v133
    %v139 = vmul.f32 %v120, %v133
    %v140 = vmul.f32 %v121, %v133
    %v141 = vmul.f32 %v122, %v133
    %v142 = vpack.c.bf16 %v134, %v134
    %v143 = vpack.c.bf16 %v135, %v135
    %v144 = vpack.c.bf16 %v136, %v136
    %v145 = vpack.c.bf16 %v137, %v137
    %v146 = vpack.c.bf16 %v138, %v138
    %v147 = vpack.c.bf16 %v139, %v139
    %v148 = vpack.c.bf16 %v140, %v140
    %v149 = vpack.c.bf16 %v141, %v141
    %v150 = vld [vmem:[#allocation2] sm:$0xff]
    %v151 = vld [vmem:[#allocation2 + $0x8] sm:$0xff]
    %v152 = vld [vmem:[#allocation2 + $0x10] sm:$0xff]
    %v153 = vld [vmem:[#allocation2 + $0x18] sm:$0xff]
    %v154 = vld [vmem:[#allocation2 + $0x20] sm:$0xff]
    %v155 = vld [vmem:[#allocation2 + $0x28] sm:$0xff]
    %v156 = vld [vmem:[#allocation2 + $0x30] sm:$0xff]
    %v157 = vld [vmem:[#allocation2 + $0x38] sm:$0xff]
    %v158 = vld [vmem:[#allocation2 + $0x40] sm:$0xff]
    %v159 = vld [vmem:[#allocation2 + $0x48] sm:$0xff]
    %v160 = vld [vmem:[#allocation2 + $0x50] sm:$0xff]
    %v161 = vld [vmem:[#allocation2 + $0x58] sm:$0xff]
    %v162 = vld [vmem:[#allocation2 + $0x60] sm:$0xff]
    %v163 = vld [vmem:[#allocation2 + $0x68] sm:$0xff]
    %v164 = vld [vmem:[#allocation2 + $0x70] sm:$0xff]
    %v165 = vld [vmem:[#allocation2 + $0x78] sm:$0xff]
    %v166 = vld [vmem:[#allocation2 + $0x80] sm:$0xff]
    %v167 = vld [vmem:[#allocation2 + $0x88] sm:$0xff]
    %v168 = vld [vmem:[#allocation2 + $0x90] sm:$0xff]
    %v169 = vld [vmem:[#allocation2 + $0x98] sm:$0xff]
    %v170 = vld [vmem:[#allocation2 + $0xa0] sm:$0xff]
    %v171 = vld [vmem:[#allocation2 + $0xa8] sm:$0xff]
    %v172 = vld [vmem:[#allocation2 + $0xb0] sm:$0xff]
    %v173 = vld [vmem:[#allocation2 + $0xb8] sm:$0xff]
    %v174 = vld [vmem:[#allocation2 + $0xc0] sm:$0xff]
    %v175 = vld [vmem:[#allocation2 + $0xc8] sm:$0xff]
    %v176 = vld [vmem:[#allocation2 + $0xd0] sm:$0xff]
    %v177 = vld [vmem:[#allocation2 + $0xd8] sm:$0xff]
    %v178 = vld [vmem:[#allocation2 + $0xe0] sm:$0xff]
    %v179 = vld [vmem:[#allocation2 + $0xe8] sm:$0xff]
    %v180 = vld [vmem:[#allocation2 + $0xf0] sm:$0xff]
    %v181 = vld [vmem:[#allocation2 + $0xf8] sm:$0xff]
    %v182 = vld [vmem:[#allocation2 + $0x100] sm:$0xff]
    %v183 = vld [vmem:[#allocation2 + $0x108] sm:$0xff]
    %v184 = vld [vmem:[#allocation2 + $0x110] sm:$0xff]
    %v185 = vld [vmem:[#allocation2 + $0x118] sm:$0xff]
    %v186 = vld [vmem:[#allocation2 + $0x120] sm:$0xff]
    %v187 = vld [vmem:[#allocation2 + $0x128] sm:$0xff]
    %v188 = vld [vmem:[#allocation2 + $0x130] sm:$0xff]
    %v189 = vld [vmem:[#allocation2 + $0x138] sm:$0xff]
    %v190 = vld [vmem:[#allocation2 + $0x140] sm:$0xff]
    %v191 = vld [vmem:[#allocation2 + $0x148] sm:$0xff]
    %v192 = vld [vmem:[#allocation2 + $0x150] sm:$0xff]
    %v193 = vld [vmem:[#allocation2 + $0x158] sm:$0xff]
    %v194 = vld [vmem:[#allocation2 + $0x160] sm:$0xff]
    %v195 = vld [vmem:[#allocation2 + $0x168] sm:$0xff]
    %v196 = vld [vmem:[#allocation2 + $0x170] sm:$0xff]
    %v197 = vld [vmem:[#allocation2 + $0x178] sm:$0xff]
    %v198 = vld [vmem:[#allocation2 + $0x180] sm:$0xff]
    %v199 = vld [vmem:[#allocation2 + $0x188] sm:$0xff]
    %v200 = vld [vmem:[#allocation2 + $0x190] sm:$0xff]
    %v201 = vld [vmem:[#allocation2 + $0x198] sm:$0xff]
    %v202 = vld [vmem:[#allocation2 + $0x1a0] sm:$0xff]
    %v203 = vld [vmem:[#allocation2 + $0x1a8] sm:$0xff]
    %v204 = vld [vmem:[#allocation2 + $0x1b0] sm:$0xff]
    %v205 = vld [vmem:[#allocation2 + $0x1b8] sm:$0xff]
    %v206 = vld [vmem:[#allocation2 + $0x1c0] sm:$0xff]
    %v207 = vld [vmem:[#allocation2 + $0x1c8] sm:$0xff]
    %v208 = vld [vmem:[#allocation2 + $0x1d0] sm:$0xff]
    %v209 = vld [vmem:[#allocation2 + $0x1d8] sm:$0xff]
    %v210 = vld [vmem:[#allocation2 + $0x1e0] sm:$0xff]
    %v211 = vld [vmem:[#allocation2 + $0x1e8] sm:$0xff]
    %v212 = vld [vmem:[#allocation2 + $0x1f0] sm:$0xff]
    %v213 = vld [vmem:[#allocation2 + $0x1f8] sm:$0xff]
    %v214 = vld [vmem:[#allocation2 + $0x200] sm:$0xff]
    %v215 = vld [vmem:[#allocation2 + $0x208] sm:$0xff]
    %v216 = vld [vmem:[#allocation2 + $0x210] sm:$0xff]
    %v217 = vld [vmem:[#allocation2 + $0x218] sm:$0xff]
    %v218 = vld [vmem:[#allocation2 + $0x220] sm:$0xff]
    %v219 = vld [vmem:[#allocation2 + $0x228] sm:$0xff]
    %v220 = vld [vmem:[#allocation2 + $0x230] sm:$0xff]
    %v221 = vld [vmem:[#allocation2 + $0x238] sm:$0xff]
    %v222 = vld [vmem:[#allocation2 + $0x240] sm:$0xff]
    %v223 = vld [vmem:[#allocation2 + $0x248] sm:$0xff]
    %v224 = vld [vmem:[#allocation2 + $0x250] sm:$0xff]
    %v225 = vld [vmem:[#allocation2 + $0x258] sm:$0xff]
    %v226 = vld [vmem:[#allocation2 + $0x260] sm:$0xff]
    %v227 = vld [vmem:[#allocation2 + $0x268] sm:$0xff]
    %v228 = vld [vmem:[#allocation2 + $0x270] sm:$0xff]
    %v229 = vld [vmem:[#allocation2 + $0x278] sm:$0xff]
    %v230 = vld [vmem:[#allocation2 + $0x280] sm:$0xff]
    %v231 = vld [vmem:[#allocation2 + $0x288] sm:$0xff]
    %v232 = vld [vmem:[#allocation2 + $0x290] sm:$0xff]
    %v233 = vld [vmem:[#allocation2 + $0x298] sm:$0xff]
    %v234 = vld [vmem:[#allocation2 + $0x2a0] sm:$0xff]
    %v235 = vld [vmem:[#allocation2 + $0x2a8] sm:$0xff]
    %v236 = vld [vmem:[#allocation2 + $0x2b0] sm:$0xff]
    %v237 = vld [vmem:[#allocation2 + $0x2b8] sm:$0xff]
    %v238 = vld [vmem:[#allocation2 + $0x2c0] sm:$0xff]
    %v239 = vld [vmem:[#allocation2 + $0x2c8] sm:$0xff]
    %v240 = vld [vmem:[#allocation2 + $0x2d0] sm:$0xff]
    %v241 = vld [vmem:[#allocation2 + $0x2d8] sm:$0xff]
    %v242 = vld [vmem:[#allocation2 + $0x2e0] sm:$0xff]
    %v243 = vld [vmem:[#allocation2 + $0x2e8] sm:$0xff]
    %v244 = vld [vmem:[#allocation2 + $0x2f0] sm:$0xff]
    %v245 = vld [vmem:[#allocation2 + $0x2f8] sm:$0xff]
    %v246 = vld [vmem:[#allocation2 + $0x300] sm:$0xff]
    %v247 = vld [vmem:[#allocation2 + $0x308] sm:$0xff]
    %v248 = vld [vmem:[#allocation2 + $0x310] sm:$0xff]
    %v249 = vld [vmem:[#allocation2 + $0x318] sm:$0xff]
    %v250 = vld [vmem:[#allocation2 + $0x320] sm:$0xff]
    %v251 = vld [vmem:[#allocation2 + $0x328] sm:$0xff]
    %v252 = vld [vmem:[#allocation2 + $0x330] sm:$0xff]
    %v253 = vld [vmem:[#allocation2 + $0x338] sm:$0xff]
    %v254 = vld [vmem:[#allocation2 + $0x340] sm:$0xff]
    %v255 = vld [vmem:[#allocation2 + $0x348] sm:$0xff]
    %v256 = vld [vmem:[#allocation2 + $0x350] sm:$0xff]
    %v257 = vld [vmem:[#allocation2 + $0x358] sm:$0xff]
    %v258 = vld [vmem:[#allocation2 + $0x360] sm:$0xff]
    %v259 = vld [vmem:[#allocation2 + $0x368] sm:$0xff]
    %v260 = vld [vmem:[#allocation2 + $0x370] sm:$0xff]
    %v261 = vld [vmem:[#allocation2 + $0x378] sm:$0xff]
    %v262 = vld [vmem:[#allocation2 + $0x380] sm:$0xff]
    %v263 = vld [vmem:[#allocation2 + $0x388] sm:$0xff]
    %v264 = vld [vmem:[#allocation2 + $0x390] sm:$0xff]
    %v265 = vld [vmem:[#allocation2 + $0x398] sm:$0xff]
    %v266 = vld [vmem:[#allocation2 + $0x3a0] sm:$0xff]
    %v267 = vld [vmem:[#allocation2 + $0x3a8] sm:$0xff]
    %v268 = vld [vmem:[#allocation2 + $0x3b0] sm:$0xff]
    %v269 = vld [vmem:[#allocation2 + $0x3b8] sm:$0xff]
    %v270 = vld [vmem:[#allocation2 + $0x3c0] sm:$0xff]
    %v271 = vld [vmem:[#allocation2 + $0x3c8] sm:$0xff]
    %v272 = vld [vmem:[#allocation2 + $0x3d0] sm:$0xff]
    %v273 = vld [vmem:[#allocation2 + $0x3d8] sm:$0xff]
    %v274 = vld [vmem:[#allocation2 + $0x3e0] sm:$0xff]
    %v275 = vld [vmem:[#allocation2 + $0x3e8] sm:$0xff]
    %v276 = vld [vmem:[#allocation2 + $0x3f0] sm:$0xff]
    %v277 = vld [vmem:[#allocation2 + $0x3f8] sm:$0xff]
    %v278 = vld [vmem:[#allocation2 + $0x400] sm:$0xff]
    %v279 = vld [vmem:[#allocation2 + $0x408] sm:$0xff]
    %v280 = vld [vmem:[#allocation2 + $0x410] sm:$0xff]
    %v281 = vld [vmem:[#allocation2 + $0x418] sm:$0xff]
    %v282 = vld [vmem:[#allocation2 + $0x420] sm:$0xff]
    %v283 = vld [vmem:[#allocation2 + $0x428] sm:$0xff]
    %v284 = vld [vmem:[#allocation2 + $0x430] sm:$0xff]
    %v285 = vld [vmem:[#allocation2 + $0x438] sm:$0xff]
    %v286 = vld [vmem:[#allocation2 + $0x440] sm:$0xff]
    %v287 = vld [vmem:[#allocation2 + $0x448] sm:$0xff]
    %v288 = vld [vmem:[#allocation2 + $0x450] sm:$0xff]
    %v289 = vld [vmem:[#allocation2 + $0x458] sm:$0xff]
    %v290 = vld [vmem:[#allocation2 + $0x460] sm:$0xff]
    %v291 = vld [vmem:[#allocation2 + $0x468] sm:$0xff]
    %v292 = vld [vmem:[#allocation2 + $0x470] sm:$0xff]
    %v293 = vld [vmem:[#allocation2 + $0x478] sm:$0xff]
    %v294 = vld [vmem:[#allocation2 + $0x480] sm:$0xff]
    %v295 = vld [vmem:[#allocation2 + $0x488] sm:$0xff]
    %v296 = vld [vmem:[#allocation2 + $0x490] sm:$0xff]
    %v297 = vld [vmem:[#allocation2 + $0x498] sm:$0xff]
    %v298 = vld [vmem:[#allocation2 + $0x4a0] sm:$0xff]
    %v299 = vld [vmem:[#allocation2 + $0x4a8] sm:$0xff]
    %v300 = vld [vmem:[#allocation2 + $0x4b0] sm:$0xff]
    %v301 = vld [vmem:[#allocation2 + $0x4b8] sm:$0xff]
    %v302 = vld [vmem:[#allocation2 + $0x4c0] sm:$0xff]
    %v303 = vld [vmem:[#allocation2 + $0x4c8] sm:$0xff]
    %v304 = vld [vmem:[#allocation2 + $0x4d0] sm:$0xff]
    %v305 = vld [vmem:[#allocation2 + $0x4d8] sm:$0xff]
    %v306 = vld [vmem:[#allocation2 + $0x4e0] sm:$0xff]
    %v307 = vld [vmem:[#allocation2 + $0x4e8] sm:$0xff]
    %v308 = vld [vmem:[#allocation2 + $0x4f0] sm:$0xff]
    %v309 = vld [vmem:[#allocation2 + $0x4f8] sm:$0xff]
    %v310 = vld [vmem:[#allocation2 + $0x500] sm:$0xff]
    %v311 = vld [vmem:[#allocation2 + $0x508] sm:$0xff]
    %v312 = vld [vmem:[#allocation2 + $0x510] sm:$0xff]
    %v313 = vld [vmem:[#allocation2 + $0x518] sm:$0xff]
    %v314 = vld [vmem:[#allocation2 + $0x520] sm:$0xff]
    %v315 = vld [vmem:[#allocation2 + $0x528] sm:$0xff]
    %v316 = vld [vmem:[#allocation2 + $0x530] sm:$0xff]
    %v317 = vld [vmem:[#allocation2 + $0x538] sm:$0xff]
    %v318 = vld [vmem:[#allocation2 + $0x540] sm:$0xff]
    %v319 = vld [vmem:[#allocation2 + $0x548] sm:$0xff]
    %v320 = vld [vmem:[#allocation2 + $0x550] sm:$0xff]
    %v321 = vld [vmem:[#allocation2 + $0x558] sm:$0xff]
    %v322 = vld [vmem:[#allocation2 + $0x560] sm:$0xff]
    %v323 = vld [vmem:[#allocation2 + $0x568] sm:$0xff]
    %v324 = vld [vmem:[#allocation2 + $0x570] sm:$0xff]
    %v325 = vld [vmem:[#allocation2 + $0x578] sm:$0xff]
    %v326 = vld [vmem:[#allocation2 + $0x580] sm:$0xff]
    %v327 = vld [vmem:[#allocation2 + $0x588] sm:$0xff]
    %v328 = vld [vmem:[#allocation2 + $0x590] sm:$0xff]
    %v329 = vld [vmem:[#allocation2 + $0x598] sm:$0xff]
    %v330 = vld [vmem:[#allocation2 + $0x5a0] sm:$0xff]
    %v331 = vld [vmem:[#allocation2 + $0x5a8] sm:$0xff]
    %v332 = vld [vmem:[#allocation2 + $0x5b0] sm:$0xff]
    %v333 = vld [vmem:[#allocation2 + $0x5b8] sm:$0xff]
    %v334 = vld [vmem:[#allocation2 + $0x5c0] sm:$0xff]
    %v335 = vld [vmem:[#allocation2 + $0x5c8] sm:$0xff]
    %v336 = vld [vmem:[#allocation2 + $0x5d0] sm:$0xff]
    %v337 = vld [vmem:[#allocation2 + $0x5d8] sm:$0xff]
    %v338 = vld [vmem:[#allocation2 + $0x5e0] sm:$0xff]
    %v339 = vld [vmem:[#allocation2 + $0x5e8] sm:$0xff]
    %v340 = vld [vmem:[#allocation2 + $0x5f0] sm:$0xff]
    %v341 = vld [vmem:[#allocation2 + $0x5f8] sm:$0xff]
    %v342 = vld [vmem:[#allocation2 + $0x600] sm:$0xff]
    %v343 = vld [vmem:[#allocation2 + $0x608] sm:$0xff]
    %v344 = vld [vmem:[#allocation2 + $0x610] sm:$0xff]
    %v345 = vld [vmem:[#allocation2 + $0x618] sm:$0xff]
    %v346 = vld [vmem:[#allocation2 + $0x620] sm:$0xff]
    %v347 = vld [vmem:[#allocation2 + $0x628] sm:$0xff]
    %v348 = vld [vmem:[#allocation2 + $0x630] sm:$0xff]
    %v349 = vld [vmem:[#allocation2 + $0x638] sm:$0xff]
    %v350 = vld [vmem:[#allocation2 + $0x640] sm:$0xff]
    %v351 = vld [vmem:[#allocation2 + $0x648] sm:$0xff]
    %v352 = vld [vmem:[#allocation2 + $0x650] sm:$0xff]
    %v353 = vld [vmem:[#allocation2 + $0x658] sm:$0xff]
    %v354 = vld [vmem:[#allocation2 + $0x660] sm:$0xff]
    %v355 = vld [vmem:[#allocation2 + $0x668] sm:$0xff]
    %v356 = vld [vmem:[#allocation2 + $0x670] sm:$0xff]
    %v357 = vld [vmem:[#allocation2 + $0x678] sm:$0xff]
    %v358 = vld [vmem:[#allocation2 + $0x680] sm:$0xff]
    %v359 = vld [vmem:[#allocation2 + $0x688] sm:$0xff]
    %v360 = vld [vmem:[#allocation2 + $0x690] sm:$0xff]
    %v361 = vld [vmem:[#allocation2 + $0x698] sm:$0xff]
    %v362 = vld [vmem:[#allocation2 + $0x6a0] sm:$0xff]
    %v363 = vld [vmem:[#allocation2 + $0x6a8] sm:$0xff]
    %v364 = vld [vmem:[#allocation2 + $0x6b0] sm:$0xff]
    %v365 = vld [vmem:[#allocation2 + $0x6b8] sm:$0xff]
    %v366 = vld [vmem:[#allocation2 + $0x6c0] sm:$0xff]
    %v367 = vld [vmem:[#allocation2 + $0x6c8] sm:$0xff]
    %v368 = vld [vmem:[#allocation2 + $0x6d0] sm:$0xff]
    %v369 = vld [vmem:[#allocation2 + $0x6d8] sm:$0xff]
    %v370 = vld [vmem:[#allocation2 + $0x6e0] sm:$0xff]
    %v371 = vld [vmem:[#allocation2 + $0x6e8] sm:$0xff]
    %v372 = vld [vmem:[#allocation2 + $0x6f0] sm:$0xff]
    %v373 = vld [vmem:[#allocation2 + $0x6f8] sm:$0xff]
    %v374 = vld [vmem:[#allocation2 + $0x700] sm:$0xff]
    %v375 = vld [vmem:[#allocation2 + $0x708] sm:$0xff]
    %v376 = vld [vmem:[#allocation2 + $0x710] sm:$0xff]
    %v377 = vld [vmem:[#allocation2 + $0x718] sm:$0xff]
    %v378 = vld [vmem:[#allocation2 + $0x720] sm:$0xff]
    %v379 = vld [vmem:[#allocation2 + $0x728] sm:$0xff]
    %v380 = vld [vmem:[#allocation2 + $0x730] sm:$0xff]
    %v381 = vld [vmem:[#allocation2 + $0x738] sm:$0xff]
    %v382 = vld [vmem:[#allocation2 + $0x740] sm:$0xff]
    %v383 = vld [vmem:[#allocation2 + $0x748] sm:$0xff]
    %v384 = vld [vmem:[#allocation2 + $0x750] sm:$0xff]
    %v385 = vld [vmem:[#allocation2 + $0x758] sm:$0xff]
    %v386 = vld [vmem:[#allocation2 + $0x760] sm:$0xff]
    %v387 = vld [vmem:[#allocation2 + $0x768] sm:$0xff]
    %v388 = vld [vmem:[#allocation2 + $0x770] sm:$0xff]
    %v389 = vld [vmem:[#allocation2 + $0x778] sm:$0xff]
    %v390 = vld [vmem:[#allocation2 + $0x780] sm:$0xff]
    %v391 = vld [vmem:[#allocation2 + $0x788] sm:$0xff]
    %v392 = vld [vmem:[#allocation2 + $0x790] sm:$0xff]
    %v393 = vld [vmem:[#allocation2 + $0x798] sm:$0xff]
    %v394 = vld [vmem:[#allocation2 + $0x7a0] sm:$0xff]
    %v395 = vld [vmem:[#allocation2 + $0x7a8] sm:$0xff]
    %v396 = vld [vmem:[#allocation2 + $0x7b0] sm:$0xff]
    %v397 = vld [vmem:[#allocation2 + $0x7b8] sm:$0xff]
    %v398 = vld [vmem:[#allocation2 + $0x7c0] sm:$0xff]
    %v399 = vld [vmem:[#allocation2 + $0x7c8] sm:$0xff]
    %v400 = vld [vmem:[#allocation2 + $0x7d0] sm:$0xff]
    %v401 = vld [vmem:[#allocation2 + $0x7d8] sm:$0xff]
    %v402 = vld [vmem:[#allocation2 + $0x7e0] sm:$0xff]
    %v403 = vld [vmem:[#allocation2 + $0x7e8] sm:$0xff]
    %v404 = vld [vmem:[#allocation2 + $0x7f0] sm:$0xff]
    %v405 = vld [vmem:[#allocation2 + $0x7f8] sm:$0xff]
    %v406 = vld [vmem:[%s3] sm:$0xf]
    %v408 = vperm.slane %v406, 0
    %v409 = vperm.slane %v406, 1
    %v410 = vperm.slane %v406, 2
    %v411 = vperm.slane %v406, 3
    %v672 = vunpack.c.l.b16 %v150
    %v673 = vunpack.c.h.b16 %v150
    %v674 = vunpack.c.l.b16 %v151
    %v675 = vunpack.c.h.b16 %v151
    %v676 = vunpack.c.l.b16 %v152
    %v677 = vunpack.c.h.b16 %v152
    %v678 = vunpack.c.l.b16 %v153
    %v679 = vunpack.c.h.b16 %v153
    %v680 = vunpack.c.l.b16 %v154
    %v681 = vunpack.c.h.b16 %v154
    %v682 = vunpack.c.l.b16 %v155
    %v683 = vunpack.c.h.b16 %v155
    %v684 = vunpack.c.l.b16 %v156
    %v685 = vunpack.c.h.b16 %v156
    %v686 = vunpack.c.l.b16 %v157
    %v687 = vunpack.c.h.b16 %v157
    %v688 = vunpack.c.l.b16 %v158
    %v689 = vunpack.c.h.b16 %v158
    %v690 = vunpack.c.l.b16 %v159
    %v691 = vunpack.c.h.b16 %v159
    %v692 = vunpack.c.l.b16 %v160
    %v693 = vunpack.c.h.b16 %v160
    %v694 = vunpack.c.l.b16 %v161
    %v695 = vunpack.c.h.b16 %v161
    %v696 = vunpack.c.l.b16 %v162
    %v697 = vunpack.c.h.b16 %v162
    %v698 = vunpack.c.l.b16 %v163
    %v699 = vunpack.c.h.b16 %v163
    %v700 = vunpack.c.l.b16 %v164
    %v701 = vunpack.c.h.b16 %v164
    %v702 = vunpack.c.l.b16 %v165
    %v703 = vunpack.c.h.b16 %v165
    %v704 = vunpack.c.l.b16 %v166
    %v705 = vunpack.c.h.b16 %v166
    %v706 = vunpack.c.l.b16 %v167
    %v707 = vunpack.c.h.b16 %v167
    %v708 = vunpack.c.l.b16 %v168
    %v709 = vunpack.c.h.b16 %v168
    %v710 = vunpack.c.l.b16 %v169
    %v711 = vunpack.c.h.b16 %v169
    %v712 = vunpack.c.l.b16 %v170
    %v713 = vunpack.c.h.b16 %v170
    %v714 = vunpack.c.l.b16 %v171
    %v715 = vunpack.c.h.b16 %v171
    %v716 = vunpack.c.l.b16 %v172
    %v717 = vunpack.c.h.b16 %v172
    %v718 = vunpack.c.l.b16 %v173
    %v719 = vunpack.c.h.b16 %v173
    %v720 = vunpack.c.l.b16 %v174
    %v721 = vunpack.c.h.b16 %v174
    %v722 = vunpack.c.l.b16 %v175
    %v723 = vunpack.c.h.b16 %v175
    %v724 = vunpack.c.l.b16 %v176
    %v725 = vunpack.c.h.b16 %v176
    %v726 = vunpack.c.l.b16 %v177
    %v727 = vunpack.c.h.b16 %v177
    %v728 = vunpack.c.l.b16 %v178
    %v729 = vunpack.c.h.b16 %v178
    %v730 = vunpack.c.l.b16 %v179
    %v731 = vunpack.c.h.b16 %v179
    %v732 = vunpack.c.l.b16 %v180
    %v733 = vunpack.c.h.b16 %v180
    %v734 = vunpack.c.l.b16 %v181
    %v735 = vunpack.c.h.b16 %v181
    %v736 = vunpack.c.l.b16 %v182
    %v737 = vunpack.c.h.b16 %v182
    %v738 = vunpack.c.l.b16 %v183
    %v739 = vunpack.c.h.b16 %v183
    %v740 = vunpack.c.l.b16 %v184
    %v741 = vunpack.c.h.b16 %v184
    %v742 = vunpack.c.l.b16 %v185
    %v743 = vunpack.c.h.b16 %v185
    %v744 = vunpack.c.l.b16 %v186
    %v745 = vunpack.c.h.b16 %v186
    %v746 = vunpack.c.l.b16 %v187
    %v747 = vunpack.c.h.b16 %v187
    %v748 = vunpack.c.l.b16 %v188
    %v749 = vunpack.c.h.b16 %v188
    %v750 = vunpack.c.l.b16 %v189
    %v751 = vunpack.c.h.b16 %v189
    %v752 = vunpack.c.l.b16 %v190
    %v753 = vunpack.c.h.b16 %v190
    %v754 = vunpack.c.l.b16 %v191
    %v755 = vunpack.c.h.b16 %v191
    %v756 = vunpack.c.l.b16 %v192
    %v757 = vunpack.c.h.b16 %v192
    %v758 = vunpack.c.l.b16 %v193
    %v759 = vunpack.c.h.b16 %v193
    %v760 = vunpack.c.l.b16 %v194
    %v761 = vunpack.c.h.b16 %v194
    %v762 = vunpack.c.l.b16 %v195
    %v763 = vunpack.c.h.b16 %v195
    %v764 = vunpack.c.l.b16 %v196
    %v765 = vunpack.c.h.b16 %v196
    %v766 = vunpack.c.l.b16 %v197
    %v767 = vunpack.c.h.b16 %v197
    %v768 = vunpack.c.l.b16 %v198
    %v769 = vunpack.c.h.b16 %v198
    %v770 = vunpack.c.l.b16 %v199
    %v771 = vunpack.c.h.b16 %v199
    %v772 = vunpack.c.l.b16 %v200
    %v773 = vunpack.c.h.b16 %v200
    %v774 = vunpack.c.l.b16 %v201
    %v775 = vunpack.c.h.b16 %v201
    %v776 = vunpack.c.l.b16 %v202
    %v777 = vunpack.c.h.b16 %v202
    %v778 = vunpack.c.l.b16 %v203
    %v779 = vunpack.c.h.b16 %v203
    %v780 = vunpack.c.l.b16 %v204
    %v781 = vunpack.c.h.b16 %v204
    %v782 = vunpack.c.l.b16 %v205
    %v783 = vunpack.c.h.b16 %v205
    %v784 = vunpack.c.l.b16 %v206
    %v785 = vunpack.c.h.b16 %v206
    %v786 = vunpack.c.l.b16 %v207
    %v787 = vunpack.c.h.b16 %v207
    %v788 = vunpack.c.l.b16 %v208
    %v789 = vunpack.c.h.b16 %v208
    %v790 = vunpack.c.l.b16 %v209
    %v791 = vunpack.c.h.b16 %v209
    %v792 = vunpack.c.l.b16 %v210
    %v793 = vunpack.c.h.b16 %v210
    %v794 = vunpack.c.l.b16 %v211
    %v795 = vunpack.c.h.b16 %v211
    %v796 = vunpack.c.l.b16 %v212
    %v797 = vunpack.c.h.b16 %v212
    %v798 = vunpack.c.l.b16 %v213
    %v799 = vunpack.c.h.b16 %v213
    %v800 = vunpack.c.l.b16 %v214
    %v801 = vunpack.c.h.b16 %v214
    %v802 = vunpack.c.l.b16 %v215
    %v803 = vunpack.c.h.b16 %v215
    %v804 = vunpack.c.l.b16 %v216
    %v805 = vunpack.c.h.b16 %v216
    %v806 = vunpack.c.l.b16 %v217
    %v807 = vunpack.c.h.b16 %v217
    %v808 = vunpack.c.l.b16 %v218
    %v809 = vunpack.c.h.b16 %v218
    %v810 = vunpack.c.l.b16 %v219
    %v811 = vunpack.c.h.b16 %v219
    %v812 = vunpack.c.l.b16 %v220
    %v813 = vunpack.c.h.b16 %v220
    %v814 = vunpack.c.l.b16 %v221
    %v815 = vunpack.c.h.b16 %v221
    %v816 = vunpack.c.l.b16 %v222
    %v817 = vunpack.c.h.b16 %v222
    %v818 = vunpack.c.l.b16 %v223
    %v819 = vunpack.c.h.b16 %v223
    %v820 = vunpack.c.l.b16 %v224
    %v821 = vunpack.c.h.b16 %v224
    %v822 = vunpack.c.l.b16 %v225
    %v823 = vunpack.c.h.b16 %v225
    %v824 = vunpack.c.l.b16 %v226
    %v825 = vunpack.c.h.b16 %v226
    %v826 = vunpack.c.l.b16 %v227
    %v827 = vunpack.c.h.b16 %v227
    %v828 = vunpack.c.l.b16 %v228
    %v829 = vunpack.c.h.b16 %v228
    %v830 = vunpack.c.l.b16 %v229
    %v831 = vunpack.c.h.b16 %v229
    %v832 = vunpack.c.l.b16 %v230
    %v833 = vunpack.c.h.b16 %v230
    %v834 = vunpack.c.l.b16 %v231
    %v835 = vunpack.c.h.b16 %v231
    %v836 = vunpack.c.l.b16 %v232
    %v837 = vunpack.c.h.b16 %v232
    %v838 = vunpack.c.l.b16 %v233
    %v839 = vunpack.c.h.b16 %v233
    %v840 = vunpack.c.l.b16 %v234
    %v841 = vunpack.c.h.b16 %v234
    %v842 = vunpack.c.l.b16 %v235
    %v843 = vunpack.c.h.b16 %v235
    %v844 = vunpack.c.l.b16 %v236
    %v845 = vunpack.c.h.b16 %v236
    %v846 = vunpack.c.l.b16 %v237
    %v847 = vunpack.c.h.b16 %v237
    %v848 = vunpack.c.l.b16 %v238
    %v849 = vunpack.c.h.b16 %v238
    %v850 = vunpack.c.l.b16 %v239
    %v851 = vunpack.c.h.b16 %v239
    %v852 = vunpack.c.l.b16 %v240
    %v853 = vunpack.c.h.b16 %v240
    %v854 = vunpack.c.l.b16 %v241
    %v855 = vunpack.c.h.b16 %v241
    %v856 = vunpack.c.l.b16 %v242
    %v857 = vunpack.c.h.b16 %v242
    %v858 = vunpack.c.l.b16 %v243
    %v859 = vunpack.c.h.b16 %v243
    %v860 = vunpack.c.l.b16 %v244
    %v861 = vunpack.c.h.b16 %v244
    %v862 = vunpack.c.l.b16 %v245
    %v863 = vunpack.c.h.b16 %v245
    %v864 = vunpack.c.l.b16 %v246
    %v865 = vunpack.c.h.b16 %v246
    %v866 = vunpack.c.l.b16 %v247
    %v867 = vunpack.c.h.b16 %v247
    %v868 = vunpack.c.l.b16 %v248
    %v869 = vunpack.c.h.b16 %v248
    %v870 = vunpack.c.l.b16 %v249
    %v871 = vunpack.c.h.b16 %v249
    %v872 = vunpack.c.l.b16 %v250
    %v873 = vunpack.c.h.b16 %v250
    %v874 = vunpack.c.l.b16 %v251
    %v875 = vunpack.c.h.b16 %v251
    %v876 = vunpack.c.l.b16 %v252
    %v877 = vunpack.c.h.b16 %v252
    %v878 = vunpack.c.l.b16 %v253
    %v879 = vunpack.c.h.b16 %v253
    %v880 = vunpack.c.l.b16 %v254
    %v881 = vunpack.c.h.b16 %v254
    %v882 = vunpack.c.l.b16 %v255
    %v883 = vunpack.c.h.b16 %v255
    %v884 = vunpack.c.l.b16 %v256
    %v885 = vunpack.c.h.b16 %v256
    %v886 = vunpack.c.l.b16 %v257
    %v887 = vunpack.c.h.b16 %v257
    %v888 = vunpack.c.l.b16 %v258
    %v889 = vunpack.c.h.b16 %v258
    %v890 = vunpack.c.l.b16 %v259
    %v891 = vunpack.c.h.b16 %v259
    %v892 = vunpack.c.l.b16 %v260
    %v893 = vunpack.c.h.b16 %v260
    %v894 = vunpack.c.l.b16 %v261
    %v895 = vunpack.c.h.b16 %v261
    %v896 = vunpack.c.l.b16 %v262
    %v897 = vunpack.c.h.b16 %v262
    %v898 = vunpack.c.l.b16 %v263
    %v899 = vunpack.c.h.b16 %v263
    %v900 = vunpack.c.l.b16 %v264
    %v901 = vunpack.c.h.b16 %v264
    %v902 = vunpack.c.l.b16 %v265
    %v903 = vunpack.c.h.b16 %v265
    %v904 = vunpack.c.l.b16 %v266
    %v905 = vunpack.c.h.b16 %v266
    %v906 = vunpack.c.l.b16 %v267
    %v907 = vunpack.c.h.b16 %v267
    %v908 = vunpack.c.l.b16 %v268
    %v909 = vunpack.c.h.b16 %v268
    %v910 = vunpack.c.l.b16 %v269
    %v911 = vunpack.c.h.b16 %v269
    %v912 = vunpack.c.l.b16 %v270
    %v913 = vunpack.c.h.b16 %v270
    %v914 = vunpack.c.l.b16 %v271
    %v915 = vunpack.c.h.b16 %v271
    %v916 = vunpack.c.l.b16 %v272
    %v917 = vunpack.c.h.b16 %v272
    %v918 = vunpack.c.l.b16 %v273
    %v919 = vunpack.c.h.b16 %v273
    %v920 = vunpack.c.l.b16 %v274
    %v921 = vunpack.c.h.b16 %v274
    %v922 = vunpack.c.l.b16 %v275
    %v923 = vunpack.c.h.b16 %v275
    %v924 = vunpack.c.l.b16 %v276
    %v925 = vunpack.c.h.b16 %v276
    %v926 = vunpack.c.l.b16 %v277
    %v927 = vunpack.c.h.b16 %v277
    %v928 = vunpack.c.l.b16 %v278
    %v929 = vunpack.c.h.b16 %v278
    %v930 = vunpack.c.l.b16 %v279
    %v931 = vunpack.c.h.b16 %v279
    %v932 = vunpack.c.l.b16 %v280
    %v933 = vunpack.c.h.b16 %v280
    %v934 = vunpack.c.l.b16 %v281
    %v935 = vunpack.c.h.b16 %v281
    %v936 = vunpack.c.l.b16 %v282
    %v937 = vunpack.c.h.b16 %v282
    %v938 = vunpack.c.l.b16 %v283
    %v939 = vunpack.c.h.b16 %v283
    %v940 = vunpack.c.l.b16 %v284
    %v941 = vunpack.c.h.b16 %v284
    %v942 = vunpack.c.l.b16 %v285
    %v943 = vunpack.c.h.b16 %v285
    %v944 = vunpack.c.l.b16 %v286
    %v945 = vunpack.c.h.b16 %v286
    %v946 = vunpack.c.l.b16 %v287
    %v947 = vunpack.c.h.b16 %v287
    %v948 = vunpack.c.l.b16 %v288
    %v949 = vunpack.c.h.b16 %v288
    %v950 = vunpack.c.l.b16 %v289
    %v951 = vunpack.c.h.b16 %v289
    %v952 = vunpack.c.l.b16 %v290
    %v953 = vunpack.c.h.b16 %v290
    %v954 = vunpack.c.l.b16 %v291
    %v955 = vunpack.c.h.b16 %v291
    %v956 = vunpack.c.l.b16 %v292
    %v957 = vunpack.c.h.b16 %v292
    %v958 = vunpack.c.l.b16 %v293
    %v959 = vunpack.c.h.b16 %v293
    %v960 = vunpack.c.l.b16 %v294
    %v961 = vunpack.c.h.b16 %v294
    %v962 = vunpack.c.l.b16 %v295
    %v963 = vunpack.c.h.b16 %v295
    %v964 = vunpack.c.l.b16 %v296
    %v965 = vunpack.c.h.b16 %v296
    %v966 = vunpack.c.l.b16 %v297
    %v967 = vunpack.c.h.b16 %v297
    %v968 = vunpack.c.l.b16 %v298
    %v969 = vunpack.c.h.b16 %v298
    %v970 = vunpack.c.l.b16 %v299
    %v971 = vunpack.c.h.b16 %v299
    %v972 = vunpack.c.l.b16 %v300
    %v973 = vunpack.c.h.b16 %v300
    %v974 = vunpack.c.l.b16 %v301
    %v975 = vunpack.c.h.b16 %v301
    %v976 = vunpack.c.l.b16 %v302
    %v977 = vunpack.c.h.b16 %v302
    %v978 = vunpack.c.l.b16 %v303
    %v979 = vunpack.c.h.b16 %v303
    %v980 = vunpack.c.l.b16 %v304
    %v981 = vunpack.c.h.b16 %v304
    %v982 = vunpack.c.l.b16 %v305
    %v983 = vunpack.c.h.b16 %v305
    %v984 = vunpack.c.l.b16 %v306
    %v985 = vunpack.c.h.b16 %v306
    %v986 = vunpack.c.l.b16 %v307
    %v987 = vunpack.c.h.b16 %v307
    %v988 = vunpack.c.l.b16 %v308
    %v989 = vunpack.c.h.b16 %v308
    %v990 = vunpack.c.l.b16 %v309
    %v991 = vunpack.c.h.b16 %v309
    %v992 = vunpack.c.l.b16 %v310
    %v993 = vunpack.c.h.b16 %v310
    %v994 = vunpack.c.l.b16 %v311
    %v995 = vunpack.c.h.b16 %v311
    %v996 = vunpack.c.l.b16 %v312
    %v997 = vunpack.c.h.b16 %v312
    %v998 = vunpack.c.l.b16 %v313
    %v999 = vunpack.c.h.b16 %v313
    %v1000 = vunpack.c.l.b16 %v314
    %v1001 = vunpack.c.h.b16 %v314
    %v1002 = vunpack.c.l.b16 %v315
    %v1003 = vunpack.c.h.b16 %v315
    %v1004 = vunpack.c.l.b16 %v316
    %v1005 = vunpack.c.h.b16 %v316
    %v1006 = vunpack.c.l.b16 %v317
    %v1007 = vunpack.c.h.b16 %v317
    %v1008 = vunpack.c.l.b16 %v318
    %v1009 = vunpack.c.h.b16 %v318
    %v1010 = vunpack.c.l.b16 %v319
    %v1011 = vunpack.c.h.b16 %v319
    %v1012 = vunpack.c.l.b16 %v320
    %v1013 = vunpack.c.h.b16 %v320
    %v1014 = vunpack.c.l.b16 %v321
    %v1015 = vunpack.c.h.b16 %v321
    %v1016 = vunpack.c.l.b16 %v322
    %v1017 = vunpack.c.h.b16 %v322
    %v1018 = vunpack.c.l.b16 %v323
    %v1019 = vunpack.c.h.b16 %v323
    %v1020 = vunpack.c.l.b16 %v324
    %v1021 = vunpack.c.h.b16 %v324
    %v1022 = vunpack.c.l.b16 %v325
    %v1023 = vunpack.c.h.b16 %v325
    %v1024 = vunpack.c.l.b16 %v326
    %v1025 = vunpack.c.h.b16 %v326
    %v1026 = vunpack.c.l.b16 %v327
    %v1027 = vunpack.c.h.b16 %v327
    %v1028 = vunpack.c.l.b16 %v328
    %v1029 = vunpack.c.h.b16 %v328
    %v1030 = vunpack.c.l.b16 %v329
    %v1031 = vunpack.c.h.b16 %v329
    %v1032 = vunpack.c.l.b16 %v330
    %v1033 = vunpack.c.h.b16 %v330
    %v1034 = vunpack.c.l.b16 %v331
    %v1035 = vunpack.c.h.b16 %v331
    %v1036 = vunpack.c.l.b16 %v332
    %v1037 = vunpack.c.h.b16 %v332
    %v1038 = vunpack.c.l.b16 %v333
    %v1039 = vunpack.c.h.b16 %v333
    %v1040 = vunpack.c.l.b16 %v334
    %v1041 = vunpack.c.h.b16 %v334
    %v1042 = vunpack.c.l.b16 %v335
    %v1043 = vunpack.c.h.b16 %v335
    %v1044 = vunpack.c.l.b16 %v336
    %v1045 = vunpack.c.h.b16 %v336
    %v1046 = vunpack.c.l.b16 %v337
    %v1047 = vunpack.c.h.b16 %v337
    %v1048 = vunpack.c.l.b16 %v338
    %v1049 = vunpack.c.h.b16 %v338
    %v1050 = vunpack.c.l.b16 %v339
    %v1051 = vunpack.c.h.b16 %v339
    %v1052 = vunpack.c.l.b16 %v340
    %v1053 = vunpack.c.h.b16 %v340
    %v1054 = vunpack.c.l.b16 %v341
    %v1055 = vunpack.c.h.b16 %v341
    %v1056 = vunpack.c.l.b16 %v342
    %v1057 = vunpack.c.h.b16 %v342
    %v1058 = vunpack.c.l.b16 %v343
    %v1059 = vunpack.c.h.b16 %v343
    %v1060 = vunpack.c.l.b16 %v344
    %v1061 = vunpack.c.h.b16 %v344
    %v1062 = vunpack.c.l.b16 %v345
    %v1063 = vunpack.c.h.b16 %v345
    %v1064 = vunpack.c.l.b16 %v346
    %v1065 = vunpack.c.h.b16 %v346
    %v1066 = vunpack.c.l.b16 %v347
    %v1067 = vunpack.c.h.b16 %v347
    %v1068 = vunpack.c.l.b16 %v348
    %v1069 = vunpack.c.h.b16 %v348
    %v1070 = vunpack.c.l.b16 %v349
    %v1071 = vunpack.c.h.b16 %v349
    %v1072 = vunpack.c.l.b16 %v350
    %v1073 = vunpack.c.h.b16 %v350
    %v1074 = vunpack.c.l.b16 %v351
    %v1075 = vunpack.c.h.b16 %v351
    %v1076 = vunpack.c.l.b16 %v352
    %v1077 = vunpack.c.h.b16 %v352
    %v1078 = vunpack.c.l.b16 %v353
    %v1079 = vunpack.c.h.b16 %v353
    %v1080 = vunpack.c.l.b16 %v354
    %v1081 = vunpack.c.h.b16 %v354
    %v1082 = vunpack.c.l.b16 %v355
    %v1083 = vunpack.c.h.b16 %v355
    %v1084 = vunpack.c.l.b16 %v356
    %v1085 = vunpack.c.h.b16 %v356
    %v1086 = vunpack.c.l.b16 %v357
    %v1087 = vunpack.c.h.b16 %v357
    %v1088 = vunpack.c.l.b16 %v358
    %v1089 = vunpack.c.h.b16 %v358
    %v1090 = vunpack.c.l.b16 %v359
    %v1091 = vunpack.c.h.b16 %v359
    %v1092 = vunpack.c.l.b16 %v360
    %v1093 = vunpack.c.h.b16 %v360
    %v1094 = vunpack.c.l.b16 %v361
    %v1095 = vunpack.c.h.b16 %v361
    %v1096 = vunpack.c.l.b16 %v362
    %v1097 = vunpack.c.h.b16 %v362
    %v1098 = vunpack.c.l.b16 %v363
    %v1099 = vunpack.c.h.b16 %v363
    %v1100 = vunpack.c.l.b16 %v364
    %v1101 = vunpack.c.h.b16 %v364
    %v1102 = vunpack.c.l.b16 %v365
    %v1103 = vunpack.c.h.b16 %v365
    %v1104 = vunpack.c.l.b16 %v366
    %v1105 = vunpack.c.h.b16 %v366
    %v1106 = vunpack.c.l.b16 %v367
    %v1107 = vunpack.c.h.b16 %v367
    %v1108 = vunpack.c.l.b16 %v368
    %v1109 = vunpack.c.h.b16 %v368
    %v1110 = vunpack.c.l.b16 %v369
    %v1111 = vunpack.c.h.b16 %v369
    %v1112 = vunpack.c.l.b16 %v370
    %v1113 = vunpack.c.h.b16 %v370
    %v1114 = vunpack.c.l.b16 %v371
    %v1115 = vunpack.c.h.b16 %v371
    %v1116 = vunpack.c.l.b16 %v372
    %v1117 = vunpack.c.h.b16 %v372
    %v1118 = vunpack.c.l.b16 %v373
    %v1119 = vunpack.c.h.b16 %v373
    %v1120 = vunpack.c.l.b16 %v374
    %v1121 = vunpack.c.h.b16 %v374
    %v1122 = vunpack.c.l.b16 %v375
    %v1123 = vunpack.c.h.b16 %v375
    %v1124 = vunpack.c.l.b16 %v376
    %v1125 = vunpack.c.h.b16 %v376
    %v1126 = vunpack.c.l.b16 %v377
    %v1127 = vunpack.c.h.b16 %v377
    %v1128 = vunpack.c.l.b16 %v378
    %v1129 = vunpack.c.h.b16 %v378
    %v1130 = vunpack.c.l.b16 %v379
    %v1131 = vunpack.c.h.b16 %v379
    %v1132 = vunpack.c.l.b16 %v380
    %v1133 = vunpack.c.h.b16 %v380
    %v1134 = vunpack.c.l.b16 %v381
    %v1135 = vunpack.c.h.b16 %v381
    %v1136 = vunpack.c.l.b16 %v382
    %v1137 = vunpack.c.h.b16 %v382
    %v1138 = vunpack.c.l.b16 %v383
    %v1139 = vunpack.c.h.b16 %v383
    %v1140 = vunpack.c.l.b16 %v384
    %v1141 = vunpack.c.h.b16 %v384
    %v1142 = vunpack.c.l.b16 %v385
    %v1143 = vunpack.c.h.b16 %v385
    %v1144 = vunpack.c.l.b16 %v386
    %v1145 = vunpack.c.h.b16 %v386
    %v1146 = vunpack.c.l.b16 %v387
    %v1147 = vunpack.c.h.b16 %v387
    %v1148 = vunpack.c.l.b16 %v388
    %v1149 = vunpack.c.h.b16 %v388
    %v1150 = vunpack.c.l.b16 %v389
    %v1151 = vunpack.c.h.b16 %v389
    %v1152 = vunpack.c.l.b16 %v390
    %v1153 = vunpack.c.h.b16 %v390
    %v1154 = vunpack.c.l.b16 %v391
    %v1155 = vunpack.c.h.b16 %v391
    %v1156 = vunpack.c.l.b16 %v392
    %v1157 = vunpack.c.h.b16 %v392
    %v1158 = vunpack.c.l.b16 %v393
    %v1159 = vunpack.c.h.b16 %v393
    %v1160 = vunpack.c.l.b16 %v394
    %v1161 = vunpack.c.h.b16 %v394
    %v1162 = vunpack.c.l.b16 %v395
    %v1163 = vunpack.c.h.b16 %v395
    %v1164 = vunpack.c.l.b16 %v396
    %v1165 = vunpack.c.h.b16 %v396
    %v1166 = vunpack.c.l.b16 %v397
    %v1167 = vunpack.c.h.b16 %v397
    %v1168 = vunpack.c.l.b16 %v398
    %v1169 = vunpack.c.h.b16 %v398
    %v1170 = vunpack.c.l.b16 %v399
    %v1171 = vunpack.c.h.b16 %v399
    %v1172 = vunpack.c.l.b16 %v400
    %v1173 = vunpack.c.h.b16 %v400
    %v1174 = vunpack.c.l.b16 %v401
    %v1175 = vunpack.c.h.b16 %v401
    %v1176 = vunpack.c.l.b16 %v402
    %v1177 = vunpack.c.h.b16 %v402
    %v1178 = vunpack.c.l.b16 %v403
    %v1179 = vunpack.c.h.b16 %v403
    %v1180 = vunpack.c.l.b16 %v404
    %v1181 = vunpack.c.h.b16 %v404
    %v1182 = vunpack.c.l.b16 %v405
    %v1183 = vunpack.c.h.b16 %v405
    %v1184 = vpack.c.b16 %v676, %v672
    %v1185 = vpack.c.b16 %v677, %v673
    %v1186 = vpack.c.b16 %v678, %v674
    %v1187 = vpack.c.b16 %v679, %v675
    %v1188 = vpack.c.b16 %v684, %v680
    %v1189 = vpack.c.b16 %v685, %v681
    %v1190 = vpack.c.b16 %v686, %v682
    %v1191 = vpack.c.b16 %v687, %v683
    %v1192 = vpack.c.b16 %v692, %v688
    %v1193 = vpack.c.b16 %v693, %v689
    %v1194 = vpack.c.b16 %v694, %v690
    %v1195 = vpack.c.b16 %v695, %v691
    %v1196 = vpack.c.b16 %v700, %v696
    %v1197 = vpack.c.b16 %v701, %v697
    %v1198 = vpack.c.b16 %v702, %v698
    %v1199 = vpack.c.b16 %v703, %v699
    %v1200 = vpack.c.b16 %v708, %v704
    %v1201 = vpack.c.b16 %v709, %v705
    %v1202 = vpack.c.b16 %v710, %v706
    %v1203 = vpack.c.b16 %v711, %v707
    %v1204 = vpack.c.b16 %v716, %v712
    %v1205 = vpack.c.b16 %v717, %v713
    %v1206 = vpack.c.b16 %v718, %v714
    %v1207 = vpack.c.b16 %v719, %v715
    %v1208 = vpack.c.b16 %v724, %v720
    %v1209 = vpack.c.b16 %v725, %v721
    %v1210 = vpack.c.b16 %v726, %v722
    %v1211 = vpack.c.b16 %v727, %v723
    %v1212 = vpack.c.b16 %v732, %v728
    %v1213 = vpack.c.b16 %v733, %v729
    %v1214 = vpack.c.b16 %v734, %v730
    %v1215 = vpack.c.b16 %v735, %v731
    %v1216 = vpack.c.b16 %v740, %v736
    %v1217 = vpack.c.b16 %v741, %v737
    %v1218 = vpack.c.b16 %v742, %v738
    %v1219 = vpack.c.b16 %v743, %v739
    %v1220 = vpack.c.b16 %v748, %v744
    %v1221 = vpack.c.b16 %v749, %v745
    %v1222 = vpack.c.b16 %v750, %v746
    %v1223 = vpack.c.b16 %v751, %v747
    %v1224 = vpack.c.b16 %v756, %v752
    %v1225 = vpack.c.b16 %v757, %v753
    %v1226 = vpack.c.b16 %v758, %v754
    %v1227 = vpack.c.b16 %v759, %v755
    %v1228 = vpack.c.b16 %v764, %v760
    %v1229 = vpack.c.b16 %v765, %v761
    %v1230 = vpack.c.b16 %v766, %v762
    %v1231 = vpack.c.b16 %v767, %v763
    %v1232 = vpack.c.b16 %v772, %v768
    %v1233 = vpack.c.b16 %v773, %v769
    %v1234 = vpack.c.b16 %v774, %v770
    %v1235 = vpack.c.b16 %v775, %v771
    %v1236 = vpack.c.b16 %v780, %v776
    %v1237 = vpack.c.b16 %v781, %v777
    %v1238 = vpack.c.b16 %v782, %v778
    %v1239 = vpack.c.b16 %v783, %v779
    %v1240 = vpack.c.b16 %v788, %v784
    %v1241 = vpack.c.b16 %v789, %v785
    %v1242 = vpack.c.b16 %v790, %v786
    %v1243 = vpack.c.b16 %v791, %v787
    %v1244 = vpack.c.b16 %v796, %v792
    %v1245 = vpack.c.b16 %v797, %v793
    %v1246 = vpack.c.b16 %v798, %v794
    %v1247 = vpack.c.b16 %v799, %v795
    %v1248 = vpack.c.b16 %v804, %v800
    %v1249 = vpack.c.b16 %v805, %v801
    %v1250 = vpack.c.b16 %v806, %v802
    %v1251 = vpack.c.b16 %v807, %v803
    %v1252 = vpack.c.b16 %v812, %v808
    %v1253 = vpack.c.b16 %v813, %v809
    %v1254 = vpack.c.b16 %v814, %v810
    %v1255 = vpack.c.b16 %v815, %v811
    %v1256 = vpack.c.b16 %v820, %v816
    %v1257 = vpack.c.b16 %v821, %v817
    %v1258 = vpack.c.b16 %v822, %v818
    %v1259 = vpack.c.b16 %v823, %v819
    %v1260 = vpack.c.b16 %v828, %v824
    %v1261 = vpack.c.b16 %v829, %v825
    %v1262 = vpack.c.b16 %v830, %v826
    %v1263 = vpack.c.b16 %v831, %v827
    %v1264 = vpack.c.b16 %v836, %v832
    %v1265 = vpack.c.b16 %v837, %v833
    %v1266 = vpack.c.b16 %v838, %v834
    %v1267 = vpack.c.b16 %v839, %v835
    %v1268 = vpack.c.b16 %v844, %v840
    %v1269 = vpack.c.b16 %v845, %v841
    %v1270 = vpack.c.b16 %v846, %v842
    %v1271 = vpack.c.b16 %v847, %v843
    %v1272 = vpack.c.b16 %v852, %v848
    %v1273 = vpack.c.b16 %v853, %v849
    %v1274 = vpack.c.b16 %v854, %v850
    %v1275 = vpack.c.b16 %v855, %v851
    %v1276 = vpack.c.b16 %v860, %v856
    %v1277 = vpack.c.b16 %v861, %v857
    %v1278 = vpack.c.b16 %v862, %v858
    %v1279 = vpack.c.b16 %v863, %v859
    %v1280 = vpack.c.b16 %v868, %v864
    %v1281 = vpack.c.b16 %v869, %v865
    %v1282 = vpack.c.b16 %v870, %v866
    %v1283 = vpack.c.b16 %v871, %v867
    %v1284 = vpack.c.b16 %v876, %v872
    %v1285 = vpack.c.b16 %v877, %v873
    %v1286 = vpack.c.b16 %v878, %v874
    %v1287 = vpack.c.b16 %v879, %v875
    %v1288 = vpack.c.b16 %v884, %v880
    %v1289 = vpack.c.b16 %v885, %v881
    %v1290 = vpack.c.b16 %v886, %v882
    %v1291 = vpack.c.b16 %v887, %v883
    %v1292 = vpack.c.b16 %v892, %v888
    %v1293 = vpack.c.b16 %v893, %v889
    %v1294 = vpack.c.b16 %v894, %v890
    %v1295 = vpack.c.b16 %v895, %v891
    %v1296 = vpack.c.b16 %v900, %v896
    %v1297 = vpack.c.b16 %v901, %v897
    %v1298 = vpack.c.b16 %v902, %v898
    %v1299 = vpack.c.b16 %v903, %v899
    %v1300 = vpack.c.b16 %v908, %v904
    %v1301 = vpack.c.b16 %v909, %v905
    %v1302 = vpack.c.b16 %v910, %v906
    %v1303 = vpack.c.b16 %v911, %v907
    %v1304 = vpack.c.b16 %v916, %v912
    %v1305 = vpack.c.b16 %v917, %v913
    %v1306 = vpack.c.b16 %v918, %v914
    %v1307 = vpack.c.b16 %v919, %v915
    %v1308 = vpack.c.b16 %v924, %v920
    %v1309 = vpack.c.b16 %v925, %v921
    %v1310 = vpack.c.b16 %v926, %v922
    %v1311 = vpack.c.b16 %v927, %v923
    %v1312 = vpack.c.b16 %v932, %v928
    %v1313 = vpack.c.b16 %v933, %v929
    %v1314 = vpack.c.b16 %v934, %v930
    %v1315 = vpack.c.b16 %v935, %v931
    %v1316 = vpack.c.b16 %v940, %v936
    %v1317 = vpack.c.b16 %v941, %v937
    %v1318 = vpack.c.b16 %v942, %v938
    %v1319 = vpack.c.b16 %v943, %v939
    %v1320 = vpack.c.b16 %v948, %v944
    %v1321 = vpack.c.b16 %v949, %v945
    %v1322 = vpack.c.b16 %v950, %v946
    %v1323 = vpack.c.b16 %v951, %v947
    %v1324 = vpack.c.b16 %v956, %v952
    %v1325 = vpack.c.b16 %v957, %v953
    %v1326 = vpack.c.b16 %v958, %v954
    %v1327 = vpack.c.b16 %v959, %v955
    %v1328 = vpack.c.b16 %v964, %v960
    %v1329 = vpack.c.b16 %v965, %v961
    %v1330 = vpack.c.b16 %v966, %v962
    %v1331 = vpack.c.b16 %v967, %v963
    %v1332 = vpack.c.b16 %v972, %v968
    %v1333 = vpack.c.b16 %v973, %v969
    %v1334 = vpack.c.b16 %v974, %v970
    %v1335 = vpack.c.b16 %v975, %v971
    %v1336 = vpack.c.b16 %v980, %v976
    %v1337 = vpack.c.b16 %v981, %v977
    %v1338 = vpack.c.b16 %v982, %v978
    %v1339 = vpack.c.b16 %v983, %v979
    %v1340 = vpack.c.b16 %v988, %v984
    %v1341 = vpack.c.b16 %v989, %v985
    %v1342 = vpack.c.b16 %v990, %v986
    %v1343 = vpack.c.b16 %v991, %v987
    %v1344 = vpack.c.b16 %v996, %v992
    %v1345 = vpack.c.b16 %v997, %v993
    %v1346 = vpack.c.b16 %v998, %v994
    %v1347 = vpack.c.b16 %v999, %v995
    %v1348 = vpack.c.b16 %v1004, %v1000
    %v1349 = vpack.c.b16 %v1005, %v1001
    %v1350 = vpack.c.b16 %v1006, %v1002
    %v1351 = vpack.c.b16 %v1007, %v1003
    %v1352 = vpack.c.b16 %v1012, %v1008
    %v1353 = vpack.c.b16 %v1013, %v1009
    %v1354 = vpack.c.b16 %v1014, %v1010
    %v1355 = vpack.c.b16 %v1015, %v1011
    %v1356 = vpack.c.b16 %v1020, %v1016
    %v1357 = vpack.c.b16 %v1021, %v1017
    %v1358 = vpack.c.b16 %v1022, %v1018
    %v1359 = vpack.c.b16 %v1023, %v1019
    %v1360 = vpack.c.b16 %v1028, %v1024
    %v1361 = vpack.c.b16 %v1029, %v1025
    %v1362 = vpack.c.b16 %v1030, %v1026
    %v1363 = vpack.c.b16 %v1031, %v1027
    %v1364 = vpack.c.b16 %v1036, %v1032
    %v1365 = vpack.c.b16 %v1037, %v1033
    %v1366 = vpack.c.b16 %v1038, %v1034
    %v1367 = vpack.c.b16 %v1039, %v1035
    %v1368 = vpack.c.b16 %v1044, %v1040
    %v1369 = vpack.c.b16 %v1045, %v1041
    %v1370 = vpack.c.b16 %v1046, %v1042
    %v1371 = vpack.c.b16 %v1047, %v1043
    %v1372 = vpack.c.b16 %v1052, %v1048
    %v1373 = vpack.c.b16 %v1053, %v1049
    %v1374 = vpack.c.b16 %v1054, %v1050
    %v1375 = vpack.c.b16 %v1055, %v1051
    %v1376 = vpack.c.b16 %v1060, %v1056
    %v1377 = vpack.c.b16 %v1061, %v1057
    %v1378 = vpack.c.b16 %v1062, %v1058
    %v1379 = vpack.c.b16 %v1063, %v1059
    %v1380 = vpack.c.b16 %v1068, %v1064
    %v1381 = vpack.c.b16 %v1069, %v1065
    %v1382 = vpack.c.b16 %v1070, %v1066
    %v1383 = vpack.c.b16 %v1071, %v1067
    %v1384 = vpack.c.b16 %v1076, %v1072
    %v1385 = vpack.c.b16 %v1077, %v1073
    %v1386 = vpack.c.b16 %v1078, %v1074
    %v1387 = vpack.c.b16 %v1079, %v1075
    %v1388 = vpack.c.b16 %v1084, %v1080
    %v1389 = vpack.c.b16 %v1085, %v1081
    %v1390 = vpack.c.b16 %v1086, %v1082
    %v1391 = vpack.c.b16 %v1087, %v1083
    %v1392 = vpack.c.b16 %v1092, %v1088
    %v1393 = vpack.c.b16 %v1093, %v1089
    %v1394 = vpack.c.b16 %v1094, %v1090
    %v1395 = vpack.c.b16 %v1095, %v1091
    %v1396 = vpack.c.b16 %v1100, %v1096
    %v1397 = vpack.c.b16 %v1101, %v1097
    %v1398 = vpack.c.b16 %v1102, %v1098
    %v1399 = vpack.c.b16 %v1103, %v1099
    %v1400 = vpack.c.b16 %v1108, %v1104
    %v1401 = vpack.c.b16 %v1109, %v1105
    %v1402 = vpack.c.b16 %v1110, %v1106
    %v1403 = vpack.c.b16 %v1111, %v1107
    %v1404 = vpack.c.b16 %v1116, %v1112
    %v1405 = vpack.c.b16 %v1117, %v1113
    %v1406 = vpack.c.b16 %v1118, %v1114
    %v1407 = vpack.c.b16 %v1119, %v1115
    %v1408 = vpack.c.b16 %v1124, %v1120
    %v1409 = vpack.c.b16 %v1125, %v1121
    %v1410 = vpack.c.b16 %v1126, %v1122
    %v1411 = vpack.c.b16 %v1127, %v1123
    %v1412 = vpack.c.b16 %v1132, %v1128
    %v1413 = vpack.c.b16 %v1133, %v1129
    %v1414 = vpack.c.b16 %v1134, %v1130
    %v1415 = vpack.c.b16 %v1135, %v1131
    %v1416 = vpack.c.b16 %v1140, %v1136
    %v1417 = vpack.c.b16 %v1141, %v1137
    %v1418 = vpack.c.b16 %v1142, %v1138
    %v1419 = vpack.c.b16 %v1143, %v1139
    %v1420 = vpack.c.b16 %v1148, %v1144
    %v1421 = vpack.c.b16 %v1149, %v1145
    %v1422 = vpack.c.b16 %v1150, %v1146
    %v1423 = vpack.c.b16 %v1151, %v1147
    %v1424 = vpack.c.b16 %v1156, %v1152
    %v1425 = vpack.c.b16 %v1157, %v1153
    %v1426 = vpack.c.b16 %v1158, %v1154
    %v1427 = vpack.c.b16 %v1159, %v1155
    %v1428 = vpack.c.b16 %v1164, %v1160
    %v1429 = vpack.c.b16 %v1165, %v1161
    %v1430 = vpack.c.b16 %v1166, %v1162
    %v1431 = vpack.c.b16 %v1167, %v1163
    %v1432 = vpack.c.b16 %v1172, %v1168
    %v1433 = vpack.c.b16 %v1173, %v1169
    %v1434 = vpack.c.b16 %v1174, %v1170
    %v1435 = vpack.c.b16 %v1175, %v1171
    %v1436 = vpack.c.b16 %v1180, %v1176
    %v1437 = vpack.c.b16 %v1181, %v1177
    %v1438 = vpack.c.b16 %v1182, %v1178
    %v1439 = vpack.c.b16 %v1183, %v1179
    %1696 = vmatpush.bf16.msra.mxu0 %v1212
    %1697 = vmatpush.bf16.msra.mxu0 %v1208
    %1698 = vmatpush.bf16.msra.mxu0 %v1204
    %1699 = vmatpush.bf16.msra.mxu0 %v1200
    %1700 = vmatpush.bf16.msra.mxu0 %v1196
    %1701 = vmatpush.bf16.msra.mxu0 %v1192
    %1702 = vmatpush.bf16.msra.mxu0 %v1188
    %1703 = vmatpush.bf16.msra.mxu0 %v1184
    %1704 = vmatmul.bf16.gmra.mxu0 %v142
    %v1705 = vpop.f32.mrf.mxu0
    %v1706 = vadd.f32 %v408, %v1705
    %v1707 = vpop.f32.mrf.mxu0
    %1708 = vdwg.mxu0
    %1709 = vmatpush.bf16.msra.mxu0 %v1244
    %1710 = vmatpush.bf16.msra.mxu0 %v1240
    %1711 = vmatpush.bf16.msra.mxu0 %v1236
    %1712 = vmatpush.bf16.msra.mxu0 %v1232
    %1713 = vmatpush.bf16.msra.mxu0 %v1228
    %1714 = vmatpush.bf16.msra.mxu0 %v1224
    %1715 = vmatpush.bf16.msra.mxu0 %v1220
    %1716 = vmatpush.bf16.msra.mxu0 %v1216
    %1717 = vmatmul.bf16.gmra.mxu0 %v143
    %v1718 = vpop.f32.mrf.mxu0
    %v1719 = vadd.f32 %v1706, %v1718
    %v1720 = vpop.f32.mrf.mxu0
    %1721 = vdwg.mxu0
    %1722 = vmatpush.bf16.msra.mxu0 %v1276
    %1723 = vmatpush.bf16.msra.mxu0 %v1272
    %1724 = vmatpush.bf16.msra.mxu0 %v1268
    %1725 = vmatpush.bf16.msra.mxu0 %v1264
    %1726 = vmatpush.bf16.msra.mxu0 %v1260
    %1727 = vmatpush.bf16.msra.mxu0 %v1256
    %1728 = vmatpush.bf16.msra.mxu0 %v1252
    %1729 = vmatpush.bf16.msra.mxu0 %v1248
    %1730 = vmatmul.bf16.gmra.mxu0 %v144
    %v1731 = vpop.f32.mrf.mxu0
    %v1732 = vadd.f32 %v1719, %v1731
    %v1733 = vpop.f32.mrf.mxu0
    %1734 = vdwg.mxu0
    %1735 = vmatpush.bf16.msra.mxu0 %v1308
    %1736 = vmatpush.bf16.msra.mxu0 %v1304
    %1737 = vmatpush.bf16.msra.mxu0 %v1300
    %1738 = vmatpush.bf16.msra.mxu0 %v1296
    %1739 = vmatpush.bf16.msra.mxu0 %v1292
    %1740 = vmatpush.bf16.msra.mxu0 %v1288
    %1741 = vmatpush.bf16.msra.mxu0 %v1284
    %1742 = vmatpush.bf16.msra.mxu0 %v1280
    %1743 = vmatmul.bf16.gmra.mxu0 %v145
    %v1744 = vpop.f32.mrf.mxu0
    %v1745 = vadd.f32 %v1732, %v1744
    %v1746 = vpop.f32.mrf.mxu0
    %1747 = vdwg.mxu0
    %1748 = vmatpush.bf16.msra.mxu0 %v1340
    %1749 = vmatpush.bf16.msra.mxu0 %v1336
    %1750 = vmatpush.bf16.msra.mxu0 %v1332
    %1751 = vmatpush.bf16.msra.mxu0 %v1328
    %1752 = vmatpush.bf16.msra.mxu0 %v1324
    %1753 = vmatpush.bf16.msra.mxu0 %v1320
    %1754 = vmatpush.bf16.msra.mxu0 %v1316
    %1755 = vmatpush.bf16.msra.mxu0 %v1312
    %1756 = vmatmul.bf16.gmra.mxu0 %v146
    %v1757 = vpop.f32.mrf.mxu0
    %v1758 = vadd.f32 %v1745, %v1757
    %v1759 = vpop.f32.mrf.mxu0
    %1760 = vdwg.mxu0
    %1761 = vmatpush.bf16.msra.mxu0 %v1372
    %1762 = vmatpush.bf16.msra.mxu0 %v1368
    %1763 = vmatpush.bf16.msra.mxu0 %v1364
    %1764 = vmatpush.bf16.msra.mxu0 %v1360
    %1765 = vmatpush.bf16.msra.mxu0 %v1356
    %1766 = vmatpush.bf16.msra.mxu0 %v1352
    %1767 = vmatpush.bf16.msra.mxu0 %v1348
    %1768 = vmatpush.bf16.msra.mxu0 %v1344
    %1769 = vmatmul.bf16.gmra.mxu0 %v147
    %v1770 = vpop.f32.mrf.mxu0
    %v1771 = vadd.f32 %v1758, %v1770
    %v1772 = vpop.f32.mrf.mxu0
    %1773 = vdwg.mxu0
    %1774 = vmatpush.bf16.msra.mxu0 %v1404
    %1775 = vmatpush.bf16.msra.mxu0 %v1400
    %1776 = vmatpush.bf16.msra.mxu0 %v1396
    %1777 = vmatpush.bf16.msra.mxu0 %v1392
    %1778 = vmatpush.bf16.msra.mxu0 %v1388
    %1779 = vmatpush.bf16.msra.mxu0 %v1384
    %1780 = vmatpush.bf16.msra.mxu0 %v1380
    %1781 = vmatpush.bf16.msra.mxu0 %v1376
    %1782 = vmatmul.bf16.gmra.mxu0 %v148
    %v1783 = vpop.f32.mrf.mxu0
    %v1784 = vadd.f32 %v1771, %v1783
    %v1785 = vpop.f32.mrf.mxu0
    %1786 = vdwg.mxu0
    %1787 = vmatpush.bf16.msra.mxu0 %v1436
    %1788 = vmatpush.bf16.msra.mxu0 %v1432
    %1789 = vmatpush.bf16.msra.mxu0 %v1428
    %1790 = vmatpush.bf16.msra.mxu0 %v1424
    %1791 = vmatpush.bf16.msra.mxu0 %v1420
    %1792 = vmatpush.bf16.msra.mxu0 %v1416
    %1793 = vmatpush.bf16.msra.mxu0 %v1412
    %1794 = vmatpush.bf16.msra.mxu0 %v1408
    %1795 = vmatmul.bf16.gmra.mxu0 %v149
    %v1796 = vpop.f32.mrf.mxu0
    %v1797 = vadd.f32 %v1784, %v1796
    %v1798 = vpop.f32.mrf.mxu0
    %1799 = vdwg.mxu0
    %1800 = vmatpush.bf16.msra.mxu0 %v1213
    %1801 = vmatpush.bf16.msra.mxu0 %v1209
    %1802 = vmatpush.bf16.msra.mxu0 %v1205
    %1803 = vmatpush.bf16.msra.mxu0 %v1201
    %1804 = vmatpush.bf16.msra.mxu0 %v1197
    %1805 = vmatpush.bf16.msra.mxu0 %v1193
    %1806 = vmatpush.bf16.msra.mxu0 %v1189
    %1807 = vmatpush.bf16.msra.mxu0 %v1185
    %1808 = vmatmul.bf16.gmra.mxu0 %v142
    %v1809 = vpop.f32.mrf.mxu0
    %v1810 = vadd.f32 %v409, %v1809
    %v1811 = vpop.f32.mrf.mxu0
    %1812 = vdwg.mxu0
    %1813 = vmatpush.bf16.msra.mxu0 %v1245
    %1814 = vmatpush.bf16.msra.mxu0 %v1241
    %1815 = vmatpush.bf16.msra.mxu0 %v1237
    %1816 = vmatpush.bf16.msra.mxu0 %v1233
    %1817 = vmatpush.bf16.msra.mxu0 %v1229
    %1818 = vmatpush.bf16.msra.mxu0 %v1225
    %1819 = vmatpush.bf16.msra.mxu0 %v1221
    %1820 = vmatpush.bf16.msra.mxu0 %v1217
    %1821 = vmatmul.bf16.gmra.mxu0 %v143
    %v1822 = vpop.f32.mrf.mxu0
    %v1823 = vadd.f32 %v1810, %v1822
    %v1824 = vpop.f32.mrf.mxu0
    %1825 = vdwg.mxu0
    %1826 = vmatpush.bf16.msra.mxu0 %v1277
    %1827 = vmatpush.bf16.msra.mxu0 %v1273
    %1828 = vmatpush.bf16.msra.mxu0 %v1269
    %1829 = vmatpush.bf16.msra.mxu0 %v1265
    %1830 = vmatpush.bf16.msra.mxu0 %v1261
    %1831 = vmatpush.bf16.msra.mxu0 %v1257
    %1832 = vmatpush.bf16.msra.mxu0 %v1253
    %1833 = vmatpush.bf16.msra.mxu0 %v1249
    %1834 = vmatmul.bf16.gmra.mxu0 %v144
    %v1835 = vpop.f32.mrf.mxu0
    %v1836 = vadd.f32 %v1823, %v1835
    %v1837 = vpop.f32.mrf.mxu0
    %1838 = vdwg.mxu0
    %1839 = vmatpush.bf16.msra.mxu0 %v1309
    %1840 = vmatpush.bf16.msra.mxu0 %v1305
    %1841 = vmatpush.bf16.msra.mxu0 %v1301
    %1842 = vmatpush.bf16.msra.mxu0 %v1297
    %1843 = vmatpush.bf16.msra.mxu0 %v1293
    %1844 = vmatpush.bf16.msra.mxu0 %v1289
    %1845 = vmatpush.bf16.msra.mxu0 %v1285
    %1846 = vmatpush.bf16.msra.mxu0 %v1281
    %1847 = vmatmul.bf16.gmra.mxu0 %v145
    %v1848 = vpop.f32.mrf.mxu0
    %v1849 = vadd.f32 %v1836, %v1848
    %v1850 = vpop.f32.mrf.mxu0
    %1851 = vdwg.mxu0
    %1852 = vmatpush.bf16.msra.mxu0 %v1341
    %1853 = vmatpush.bf16.msra.mxu0 %v1337
    %1854 = vmatpush.bf16.msra.mxu0 %v1333
    %1855 = vmatpush.bf16.msra.mxu0 %v1329
    %1856 = vmatpush.bf16.msra.mxu0 %v1325
    %1857 = vmatpush.bf16.msra.mxu0 %v1321
    %1858 = vmatpush.bf16.msra.mxu0 %v1317
    %1859 = vmatpush.bf16.msra.mxu0 %v1313
    %1860 = vmatmul.bf16.gmra.mxu0 %v146
    %v1861 = vpop.f32.mrf.mxu0
    %v1862 = vadd.f32 %v1849, %v1861
    %v1863 = vpop.f32.mrf.mxu0
    %1864 = vdwg.mxu0
    %1865 = vmatpush.bf16.msra.mxu0 %v1373
    %1866 = vmatpush.bf16.msra.mxu0 %v1369
    %1867 = vmatpush.bf16.msra.mxu0 %v1365
    %1868 = vmatpush.bf16.msra.mxu0 %v1361
    %1869 = vmatpush.bf16.msra.mxu0 %v1357
    %1870 = vmatpush.bf16.msra.mxu0 %v1353
    %1871 = vmatpush.bf16.msra.mxu0 %v1349
    %1872 = vmatpush.bf16.msra.mxu0 %v1345
    %1873 = vmatmul.bf16.gmra.mxu0 %v147
    %v1874 = vpop.f32.mrf.mxu0
    %v1875 = vadd.f32 %v1862, %v1874
    %v1876 = vpop.f32.mrf.mxu0
    %1877 = vdwg.mxu0
    %1878 = vmatpush.bf16.msra.mxu0 %v1405
    %1879 = vmatpush.bf16.msra.mxu0 %v1401
    %1880 = vmatpush.bf16.msra.mxu0 %v1397
    %1881 = vmatpush.bf16.msra.mxu0 %v1393
    %1882 = vmatpush.bf16.msra.mxu0 %v1389
    %1883 = vmatpush.bf16.msra.mxu0 %v1385
    %1884 = vmatpush.bf16.msra.mxu0 %v1381
    %1885 = vmatpush.bf16.msra.mxu0 %v1377
    %1886 = vmatmul.bf16.gmra.mxu0 %v148
    %v1887 = vpop.f32.mrf.mxu0
    %v1888 = vadd.f32 %v1875, %v1887
    %v1889 = vpop.f32.mrf.mxu0
    %1890 = vdwg.mxu0
    %1891 = vmatpush.bf16.msra.mxu0 %v1437
    %1892 = vmatpush.bf16.msra.mxu0 %v1433
    %1893 = vmatpush.bf16.msra.mxu0 %v1429
    %1894 = vmatpush.bf16.msra.mxu0 %v1425
    %1895 = vmatpush.bf16.msra.mxu0 %v1421
    %1896 = vmatpush.bf16.msra.mxu0 %v1417
    %1897 = vmatpush.bf16.msra.mxu0 %v1413
    %1898 = vmatpush.bf16.msra.mxu0 %v1409
    %1899 = vmatmul.bf16.gmra.mxu0 %v149
    %v1900 = vpop.f32.mrf.mxu0
    %v1901 = vadd.f32 %v1888, %v1900
    %v1902 = vpop.f32.mrf.mxu0
    %1903 = vdwg.mxu0
    %1904 = vmatpush.bf16.msra.mxu0 %v1214
    %1905 = vmatpush.bf16.msra.mxu0 %v1210
    %1906 = vmatpush.bf16.msra.mxu0 %v1206
    %1907 = vmatpush.bf16.msra.mxu0 %v1202
    %1908 = vmatpush.bf16.msra.mxu0 %v1198
    %1909 = vmatpush.bf16.msra.mxu0 %v1194
    %1910 = vmatpush.bf16.msra.mxu0 %v1190
    %1911 = vmatpush.bf16.msra.mxu0 %v1186
    %1912 = vmatmul.bf16.gmra.mxu0 %v142
    %v1913 = vpop.f32.mrf.mxu0
    %v1914 = vadd.f32 %v410, %v1913
    %v1915 = vpop.f32.mrf.mxu0
    %1916 = vdwg.mxu0
    %1917 = vmatpush.bf16.msra.mxu0 %v1246
    %1918 = vmatpush.bf16.msra.mxu0 %v1242
    %1919 = vmatpush.bf16.msra.mxu0 %v1238
    %1920 = vmatpush.bf16.msra.mxu0 %v1234
    %1921 = vmatpush.bf16.msra.mxu0 %v1230
    %1922 = vmatpush.bf16.msra.mxu0 %v1226
    %1923 = vmatpush.bf16.msra.mxu0 %v1222
    %1924 = vmatpush.bf16.msra.mxu0 %v1218
    %1925 = vmatmul.bf16.gmra.mxu0 %v143
    %v1926 = vpop.f32.mrf.mxu0
    %v1927 = vadd.f32 %v1914, %v1926
    %v1928 = vpop.f32.mrf.mxu0
    %1929 = vdwg.mxu0
    %1930 = vmatpush.bf16.msra.mxu0 %v1278
    %1931 = vmatpush.bf16.msra.mxu0 %v1274
    %1932 = vmatpush.bf16.msra.mxu0 %v1270
    %1933 = vmatpush.bf16.msra.mxu0 %v1266
    %1934 = vmatpush.bf16.msra.mxu0 %v1262
    %1935 = vmatpush.bf16.msra.mxu0 %v1258
    %1936 = vmatpush.bf16.msra.mxu0 %v1254
    %1937 = vmatpush.bf16.msra.mxu0 %v1250
    %1938 = vmatmul.bf16.gmra.mxu0 %v144
    %v1939 = vpop.f32.mrf.mxu0
    %v1940 = vadd.f32 %v1927, %v1939
    %v1941 = vpop.f32.mrf.mxu0
    %1942 = vdwg.mxu0
    %1943 = vmatpush.bf16.msra.mxu0 %v1310
    %1944 = vmatpush.bf16.msra.mxu0 %v1306
    %1945 = vmatpush.bf16.msra.mxu0 %v1302
    %1946 = vmatpush.bf16.msra.mxu0 %v1298
    %1947 = vmatpush.bf16.msra.mxu0 %v1294
    %1948 = vmatpush.bf16.msra.mxu0 %v1290
    %1949 = vmatpush.bf16.msra.mxu0 %v1286
    %1950 = vmatpush.bf16.msra.mxu0 %v1282
    %1951 = vmatmul.bf16.gmra.mxu0 %v145
    %v1952 = vpop.f32.mrf.mxu0
    %v1953 = vadd.f32 %v1940, %v1952
    %v1954 = vpop.f32.mrf.mxu0
    %1955 = vdwg.mxu0
    %1956 = vmatpush.bf16.msra.mxu0 %v1342
    %1957 = vmatpush.bf16.msra.mxu0 %v1338
    %1958 = vmatpush.bf16.msra.mxu0 %v1334
    %1959 = vmatpush.bf16.msra.mxu0 %v1330
    %1960 = vmatpush.bf16.msra.mxu0 %v1326
    %1961 = vmatpush.bf16.msra.mxu0 %v1322
    %1962 = vmatpush.bf16.msra.mxu0 %v1318
    %1963 = vmatpush.bf16.msra.mxu0 %v1314
    %1964 = vmatmul.bf16.gmra.mxu0 %v146
    %v1965 = vpop.f32.mrf.mxu0
    %v1966 = vadd.f32 %v1953, %v1965
    %v1967 = vpop.f32.mrf.mxu0
    %1968 = vdwg.mxu0
    %1969 = vmatpush.bf16.msra.mxu0 %v1374
    %1970 = vmatpush.bf16.msra.mxu0 %v1370
    %1971 = vmatpush.bf16.msra.mxu0 %v1366
    %1972 = vmatpush.bf16.msra.mxu0 %v1362
    %1973 = vmatpush.bf16.msra.mxu0 %v1358
    %1974 = vmatpush.bf16.msra.mxu0 %v1354
    %1975 = vmatpush.bf16.msra.mxu0 %v1350
    %1976 = vmatpush.bf16.msra.mxu0 %v1346
    %1977 = vmatmul.bf16.gmra.mxu0 %v147
    %v1978 = vpop.f32.mrf.mxu0
    %v1979 = vadd.f32 %v1966, %v1978
    %v1980 = vpop.f32.mrf.mxu0
    %1981 = vdwg.mxu0
    %1982 = vmatpush.bf16.msra.mxu0 %v1406
    %1983 = vmatpush.bf16.msra.mxu0 %v1402
    %1984 = vmatpush.bf16.msra.mxu0 %v1398
    %1985 = vmatpush.bf16.msra.mxu0 %v1394
    %1986 = vmatpush.bf16.msra.mxu0 %v1390
    %1987 = vmatpush.bf16.msra.mxu0 %v1386
    %1988 = vmatpush.bf16.msra.mxu0 %v1382
    %1989 = vmatpush.bf16.msra.mxu0 %v1378
    %1990 = vmatmul.bf16.gmra.mxu0 %v148
    %v1991 = vpop.f32.mrf.mxu0
    %v1992 = vadd.f32 %v1979, %v1991
    %v1993 = vpop.f32.mrf.mxu0
    %1994 = vdwg.mxu0
    %1995 = vmatpush.bf16.msra.mxu0 %v1438
    %1996 = vmatpush.bf16.msra.mxu0 %v1434
    %1997 = vmatpush.bf16.msra.mxu0 %v1430
    %1998 = vmatpush.bf16.msra.mxu0 %v1426
    %1999 = vmatpush.bf16.msra.mxu0 %v1422
    %2000 = vmatpush.bf16.msra.mxu0 %v1418
    %2001 = vmatpush.bf16.msra.mxu0 %v1414
    %2002 = vmatpush.bf16.msra.mxu0 %v1410
    %2003 = vmatmul.bf16.gmra.mxu0 %v149
    %v2004 = vpop.f32.mrf.mxu0
    %v2005 = vadd.f32 %v1992, %v2004
    %v2006 = vpop.f32.mrf.mxu0
    %2007 = vdwg.mxu0
    %2008 = vmatpush.bf16.msra.mxu0 %v1215
    %2009 = vmatpush.bf16.msra.mxu0 %v1211
    %2010 = vmatpush.bf16.msra.mxu0 %v1207
    %2011 = vmatpush.bf16.msra.mxu0 %v1203
    %2012 = vmatpush.bf16.msra.mxu0 %v1199
    %2013 = vmatpush.bf16.msra.mxu0 %v1195
    %2014 = vmatpush.bf16.msra.mxu0 %v1191
    %2015 = vmatpush.bf16.msra.mxu0 %v1187
    %2016 = vmatmul.bf16.gmra.mxu0 %v142
    %v2017 = vpop.f32.mrf.mxu0
    %v2018 = vadd.f32 %v411, %v2017
    %v2019 = vpop.f32.mrf.mxu0
    %2020 = vdwg.mxu0
    %2021 = vmatpush.bf16.msra.mxu0 %v1247
    %2022 = vmatpush.bf16.msra.mxu0 %v1243
    %2023 = vmatpush.bf16.msra.mxu0 %v1239
    %2024 = vmatpush.bf16.msra.mxu0 %v1235
    %2025 = vmatpush.bf16.msra.mxu0 %v1231
    %2026 = vmatpush.bf16.msra.mxu0 %v1227
    %2027 = vmatpush.bf16.msra.mxu0 %v1223
    %2028 = vmatpush.bf16.msra.mxu0 %v1219
    %2029 = vmatmul.bf16.gmra.mxu0 %v143
    %v2030 = vpop.f32.mrf.mxu0
    %v2031 = vadd.f32 %v2018, %v2030
    %v2032 = vpop.f32.mrf.mxu0
    %2033 = vdwg.mxu0
    %2034 = vmatpush.bf16.msra.mxu0 %v1279
    %2035 = vmatpush.bf16.msra.mxu0 %v1275
    %2036 = vmatpush.bf16.msra.mxu0 %v1271
    %2037 = vmatpush.bf16.msra.mxu0 %v1267
    %2038 = vmatpush.bf16.msra.mxu0 %v1263
    %2039 = vmatpush.bf16.msra.mxu0 %v1259
    %2040 = vmatpush.bf16.msra.mxu0 %v1255
    %2041 = vmatpush.bf16.msra.mxu0 %v1251
    %2042 = vmatmul.bf16.gmra.mxu0 %v144
    %v2043 = vpop.f32.mrf.mxu0
    %v2044 = vadd.f32 %v2031, %v2043
    %v2045 = vpop.f32.mrf.mxu0
    %2046 = vdwg.mxu0
    %2047 = vmatpush.bf16.msra.mxu0 %v1311
    %2048 = vmatpush.bf16.msra.mxu0 %v1307
    %2049 = vmatpush.bf16.msra.mxu0 %v1303
    %2050 = vmatpush.bf16.msra.mxu0 %v1299
    %2051 = vmatpush.bf16.msra.mxu0 %v1295
    %2052 = vmatpush.bf16.msra.mxu0 %v1291
    %2053 = vmatpush.bf16.msra.mxu0 %v1287
    %2054 = vmatpush.bf16.msra.mxu0 %v1283
    %2055 = vmatmul.bf16.gmra.mxu0 %v145
    %v2056 = vpop.f32.mrf.mxu0
    %v2057 = vadd.f32 %v2044, %v2056
    %v2058 = vpop.f32.mrf.mxu0
    %2059 = vdwg.mxu0
    %2060 = vmatpush.bf16.msra.mxu0 %v1343
    %2061 = vmatpush.bf16.msra.mxu0 %v1339
    %2062 = vmatpush.bf16.msra.mxu0 %v1335
    %2063 = vmatpush.bf16.msra.mxu0 %v1331
    %2064 = vmatpush.bf16.msra.mxu0 %v1327
    %2065 = vmatpush.bf16.msra.mxu0 %v1323
    %2066 = vmatpush.bf16.msra.mxu0 %v1319
    %2067 = vmatpush.bf16.msra.mxu0 %v1315
    %2068 = vmatmul.bf16.gmra.mxu0 %v146
    %v2069 = vpop.f32.mrf.mxu0
    %v2070 = vadd.f32 %v2057, %v2069
    %v2071 = vpop.f32.mrf.mxu0
    %2072 = vdwg.mxu0
    %2073 = vmatpush.bf16.msra.mxu0 %v1375
    %2074 = vmatpush.bf16.msra.mxu0 %v1371
    %2075 = vmatpush.bf16.msra.mxu0 %v1367
    %2076 = vmatpush.bf16.msra.mxu0 %v1363
    %2077 = vmatpush.bf16.msra.mxu0 %v1359
    %2078 = vmatpush.bf16.msra.mxu0 %v1355
    %2079 = vmatpush.bf16.msra.mxu0 %v1351
    %2080 = vmatpush.bf16.msra.mxu0 %v1347
    %2081 = vmatmul.bf16.gmra.mxu0 %v147
    %v2082 = vpop.f32.mrf.mxu0
    %v2083 = vadd.f32 %v2070, %v2082
    %v2084 = vpop.f32.mrf.mxu0
    %2085 = vdwg.mxu0
    %2086 = vmatpush.bf16.msra.mxu0 %v1407
    %2087 = vmatpush.bf16.msra.mxu0 %v1403
    %2088 = vmatpush.bf16.msra.mxu0 %v1399
    %2089 = vmatpush.bf16.msra.mxu0 %v1395
    %2090 = vmatpush.bf16.msra.mxu0 %v1391
    %2091 = vmatpush.bf16.msra.mxu0 %v1387
    %2092 = vmatpush.bf16.msra.mxu0 %v1383
    %2093 = vmatpush.bf16.msra.mxu0 %v1379
    %2094 = vmatmul.bf16.gmra.mxu0 %v148
    %v2095 = vpop.f32.mrf.mxu0
    %v2096 = vadd.f32 %v2083, %v2095
    %v2097 = vpop.f32.mrf.mxu0
    %2098 = vdwg.mxu0
    %2099 = vmatpush.bf16.msra.mxu0 %v1439
    %2100 = vmatpush.bf16.msra.mxu0 %v1435
    %2101 = vmatpush.bf16.msra.mxu0 %v1431
    %2102 = vmatpush.bf16.msra.mxu0 %v1427
    %2103 = vmatpush.bf16.msra.mxu0 %v1423
    %2104 = vmatpush.bf16.msra.mxu0 %v1419
    %2105 = vmatpush.bf16.msra.mxu0 %v1415
    %2106 = vmatpush.bf16.msra.mxu0 %v1411
    %2107 = vmatmul.bf16.gmra.mxu0 %v149
    %v2108 = vpop.f32.mrf.mxu0
    %v2109 = vadd.f32 %v2096, %v2108
    %v2110 = vpop.f32.mrf.mxu0
    %2111 = vdwg.mxu0
    %v2112 = vmax.f32 %v1797, 0.0
    %v2113 = vmax.f32 %v1901, 0.0
    %v2114 = vmax.f32 %v2005, 0.0
    %v2115 = vmax.f32 %v2109, 0.0
    %v2116 = vpack.c.bf16 %v2112, %v2112
    %v2117 = vpack.c.bf16 %v2113, %v2113
    %v2118 = vpack.c.bf16 %v2114, %v2114
    %v2119 = vpack.c.bf16 %v2115, %v2115
    %v2120 = vld [vmem:[%s4] sm:$0xff]
    %v2121 = vld [vmem:[%s4 + $0x8] sm:$0xff]
    %v2122 = vld [vmem:[%s4 + $0x10] sm:$0xff]
    %v2123 = vld [vmem:[%s4 + $0x18] sm:$0xff]
    %v2124 = vld [vmem:[%s4 + $0x20] sm:$0xff]
    %v2125 = vld [vmem:[%s4 + $0x28] sm:$0xff]
    %v2126 = vld [vmem:[%s4 + $0x30] sm:$0xff]
    %v2127 = vld [vmem:[%s4 + $0x38] sm:$0xff]
    %v2128 = vld [vmem:[%s4 + $0x40] sm:$0xff]
    %v2129 = vld [vmem:[%s4 + $0x48] sm:$0xff]
    %v2130 = vld [vmem:[%s4 + $0x50] sm:$0xff]
    %v2131 = vld [vmem:[%s4 + $0x58] sm:$0xff]
    %v2132 = vld [vmem:[%s4 + $0x60] sm:$0xff]
    %v2133 = vld [vmem:[%s4 + $0x68] sm:$0xff]
    %v2134 = vld [vmem:[%s4 + $0x70] sm:$0xff]
    %v2135 = vld [vmem:[%s4 + $0x78] sm:$0xff]
    %v2136 = vld [vmem:[%s4 + $0x80] sm:$0xff]
    %v2137 = vld [vmem:[%s4 + $0x88] sm:$0xff]
    %v2138 = vld [vmem:[%s4 + $0x90] sm:$0xff]
    %v2139 = vld [vmem:[%s4 + $0x98] sm:$0xff]
    %v2140 = vld [vmem:[%s4 + $0xa0] sm:$0xff]
    %v2141 = vld [vmem:[%s4 + $0xa8] sm:$0xff]
    %v2142 = vld [vmem:[%s4 + $0xb0] sm:$0xff]
    %v2143 = vld [vmem:[%s4 + $0xb8] sm:$0xff]
    %v2144 = vld [vmem:[%s4 + $0xc0] sm:$0xff]
    %v2145 = vld [vmem:[%s4 + $0xc8] sm:$0xff]
    %v2146 = vld [vmem:[%s4 + $0xd0] sm:$0xff]
    %v2147 = vld [vmem:[%s4 + $0xd8] sm:$0xff]
    %v2148 = vld [vmem:[%s4 + $0xe0] sm:$0xff]
    %v2149 = vld [vmem:[%s4 + $0xe8] sm:$0xff]
    %v2150 = vld [vmem:[%s4 + $0xf0] sm:$0xff]
    %v2151 = vld [vmem:[%s4 + $0xf8] sm:$0xff]
    %v2152 = vld [vmem:[%s4 + $0x100] sm:$0xff]
    %v2153 = vld [vmem:[%s4 + $0x108] sm:$0xff]
    %v2154 = vld [vmem:[%s4 + $0x110] sm:$0xff]
    %v2155 = vld [vmem:[%s4 + $0x118] sm:$0xff]
    %v2156 = vld [vmem:[%s4 + $0x120] sm:$0xff]
    %v2157 = vld [vmem:[%s4 + $0x128] sm:$0xff]
    %v2158 = vld [vmem:[%s4 + $0x130] sm:$0xff]
    %v2159 = vld [vmem:[%s4 + $0x138] sm:$0xff]
    %v2160 = vld [vmem:[%s4 + $0x140] sm:$0xff]
    %v2161 = vld [vmem:[%s4 + $0x148] sm:$0xff]
    %v2162 = vld [vmem:[%s4 + $0x150] sm:$0xff]
    %v2163 = vld [vmem:[%s4 + $0x158] sm:$0xff]
    %v2164 = vld [vmem:[%s4 + $0x160] sm:$0xff]
    %v2165 = vld [vmem:[%s4 + $0x168] sm:$0xff]
    %v2166 = vld [vmem:[%s4 + $0x170] sm:$0xff]
    %v2167 = vld [vmem:[%s4 + $0x178] sm:$0xff]
    %v2168 = vld [vmem:[%s4 + $0x180] sm:$0xff]
    %v2169 = vld [vmem:[%s4 + $0x188] sm:$0xff]
    %v2170 = vld [vmem:[%s4 + $0x190] sm:$0xff]
    %v2171 = vld [vmem:[%s4 + $0x198] sm:$0xff]
    %v2172 = vld [vmem:[%s4 + $0x1a0] sm:$0xff]
    %v2173 = vld [vmem:[%s4 + $0x1a8] sm:$0xff]
    %v2174 = vld [vmem:[%s4 + $0x1b0] sm:$0xff]
    %v2175 = vld [vmem:[%s4 + $0x1b8] sm:$0xff]
    %v2176 = vld [vmem:[%s4 + $0x1c0] sm:$0xff]
    %v2177 = vld [vmem:[%s4 + $0x1c8] sm:$0xff]
    %v2178 = vld [vmem:[%s4 + $0x1d0] sm:$0xff]
    %v2179 = vld [vmem:[%s4 + $0x1d8] sm:$0xff]
    %v2180 = vld [vmem:[%s4 + $0x1e0] sm:$0xff]
    %v2181 = vld [vmem:[%s4 + $0x1e8] sm:$0xff]
    %v2182 = vld [vmem:[%s4 + $0x1f0] sm:$0xff]
    %v2183 = vld [vmem:[%s4 + $0x1f8] sm:$0xff]
    %v2184 = vld [vmem:[%s5] sm:$0x3]
    %v2186 = vperm.slane %v2184, 0
    %v2187 = vperm.slane %v2184, 1
    %v2254 = vunpack.c.l.b16 %v2120
    %v2255 = vunpack.c.h.b16 %v2120
    %v2256 = vunpack.c.l.b16 %v2121
    %v2257 = vunpack.c.h.b16 %v2121
    %v2258 = vunpack.c.l.b16 %v2122
    %v2259 = vunpack.c.h.b16 %v2122
    %v2260 = vunpack.c.l.b16 %v2123
    %v2261 = vunpack.c.h.b16 %v2123
    %v2262 = vunpack.c.l.b16 %v2124
    %v2263 = vunpack.c.h.b16 %v2124
    %v2264 = vunpack.c.l.b16 %v2125
    %v2265 = vunpack.c.h.b16 %v2125
    %v2266 = vunpack.c.l.b16 %v2126
    %v2267 = vunpack.c.h.b16 %v2126
    %v2268 = vunpack.c.l.b16 %v2127
    %v2269 = vunpack.c.h.b16 %v2127
    %v2270 = vunpack.c.l.b16 %v2128
    %v2271 = vunpack.c.h.b16 %v2128
    %v2272 = vunpack.c.l.b16 %v2129
    %v2273 = vunpack.c.h.b16 %v2129
    %v2274 = vunpack.c.l.b16 %v2130
    %v2275 = vunpack.c.h.b16 %v2130
    %v2276 = vunpack.c.l.b16 %v2131
    %v2277 = vunpack.c.h.b16 %v2131
    %v2278 = vunpack.c.l.b16 %v2132
    %v2279 = vunpack.c.h.b16 %v2132
    %v2280 = vunpack.c.l.b16 %v2133
    %v2281 = vunpack.c.h.b16 %v2133
    %v2282 = vunpack.c.l.b16 %v2134
    %v2283 = vunpack.c.h.b16 %v2134
    %v2284 = vunpack.c.l.b16 %v2135
    %v2285 = vunpack.c.h.b16 %v2135
    %v2286 = vunpack.c.l.b16 %v2136
    %v2287 = vunpack.c.h.b16 %v2136
    %v2288 = vunpack.c.l.b16 %v2137
    %v2289 = vunpack.c.h.b16 %v2137
    %v2290 = vunpack.c.l.b16 %v2138
    %v2291 = vunpack.c.h.b16 %v2138
    %v2292 = vunpack.c.l.b16 %v2139
    %v2293 = vunpack.c.h.b16 %v2139
    %v2294 = vunpack.c.l.b16 %v2140
    %v2295 = vunpack.c.h.b16 %v2140
    %v2296 = vunpack.c.l.b16 %v2141
    %v2297 = vunpack.c.h.b16 %v2141
    %v2298 = vunpack.c.l.b16 %v2142
    %v2299 = vunpack.c.h.b16 %v2142
    %v2300 = vunpack.c.l.b16 %v2143
    %v2301 = vunpack.c.h.b16 %v2143
    %v2302 = vunpack.c.l.b16 %v2144
    %v2303 = vunpack.c.h.b16 %v2144
    %v2304 = vunpack.c.l.b16 %v2145
    %v2305 = vunpack.c.h.b16 %v2145
    %v2306 = vunpack.c.l.b16 %v2146
    %v2307 = vunpack.c.h.b16 %v2146
    %v2308 = vunpack.c.l.b16 %v2147
    %v2309 = vunpack.c.h.b16 %v2147
    %v2310 = vunpack.c.l.b16 %v2148
    %v2311 = vunpack.c.h.b16 %v2148
    %v2312 = vunpack.c.l.b16 %v2149
    %v2313 = vunpack.c.h.b16 %v2149
    %v2314 = vunpack.c.l.b16 %v2150
    %v2315 = vunpack.c.h.b16 %v2150
    %v2316 = vunpack.c.l.b16 %v2151
    %v2317 = vunpack.c.h.b16 %v2151
    %v2318 = vunpack.c.l.b16 %v2152
    %v2319 = vunpack.c.h.b16 %v2152
    %v2320 = vunpack.c.l.b16 %v2153
    %v2321 = vunpack.c.h.b16 %v2153
    %v2322 = vunpack.c.l.b16 %v2154
    %v2323 = vunpack.c.h.b16 %v2154
    %v2324 = vunpack.c.l.b16 %v2155
    %v2325 = vunpack.c.h.b16 %v2155
    %v2326 = vunpack.c.l.b16 %v2156
    %v2327 = vunpack.c.h.b16 %v2156
    %v2328 = vunpack.c.l.b16 %v2157
    %v2329 = vunpack.c.h.b16 %v2157
    %v2330 = vunpack.c.l.b16 %v2158
    %v2331 = vunpack.c.h.b16 %v2158
    %v2332 = vunpack.c.l.b16 %v2159
    %v2333 = vunpack.c.h.b16 %v2159
    %v2334 = vunpack.c.l.b16 %v2160
    %v2335 = vunpack.c.h.b16 %v2160
    %v2336 = vunpack.c.l.b16 %v2161
    %v2337 = vunpack.c.h.b16 %v2161
    %v2338 = vunpack.c.l.b16 %v2162
    %v2339 = vunpack.c.h.b16 %v2162
    %v2340 = vunpack.c.l.b16 %v2163
    %v2341 = vunpack.c.h.b16 %v2163
    %v2342 = vunpack.c.l.b16 %v2164
    %v2343 = vunpack.c.h.b16 %v2164
    %v2344 = vunpack.c.l.b16 %v2165
    %v2345 = vunpack.c.h.b16 %v2165
    %v2346 = vunpack.c.l.b16 %v2166
    %v2347 = vunpack.c.h.b16 %v2166
    %v2348 = vunpack.c.l.b16 %v2167
    %v2349 = vunpack.c.h.b16 %v2167
    %v2350 = vunpack.c.l.b16 %v2168
    %v2351 = vunpack.c.h.b16 %v2168
    %v2352 = vunpack.c.l.b16 %v2169
    %v2353 = vunpack.c.h.b16 %v2169
    %v2354 = vunpack.c.l.b16 %v2170
    %v2355 = vunpack.c.h.b16 %v2170
    %v2356 = vunpack.c.l.b16 %v2171
    %v2357 = vunpack.c.h.b16 %v2171
    %v2358 = vunpack.c.l.b16 %v2172
    %v2359 = vunpack.c.h.b16 %v2172
    %v2360 = vunpack.c.l.b16 %v2173
    %v2361 = vunpack.c.h.b16 %v2173
    %v2362 = vunpack.c.l.b16 %v2174
    %v2363 = vunpack.c.h.b16 %v2174
    %v2364 = vunpack.c.l.b16 %v2175
    %v2365 = vunpack.c.h.b16 %v2175
    %v2366 = vunpack.c.l.b16 %v2176
    %v2367 = vunpack.c.h.b16 %v2176
    %v2368 = vunpack.c.l.b16 %v2177
    %v2369 = vunpack.c.h.b16 %v2177
    %v2370 = vunpack.c.l.b16 %v2178
    %v2371 = vunpack.c.h.b16 %v2178
    %v2372 = vunpack.c.l.b16 %v2179
    %v2373 = vunpack.c.h.b16 %v2179
    %v2374 = vunpack.c.l.b16 %v2180
    %v2375 = vunpack.c.h.b16 %v2180
    %v2376 = vunpack.c.l.b16 %v2181
    %v2377 = vunpack.c.h.b16 %v2181
    %v2378 = vunpack.c.l.b16 %v2182
    %v2379 = vunpack.c.h.b16 %v2182
    %v2380 = vunpack.c.l.b16 %v2183
    %v2381 = vunpack.c.h.b16 %v2183
    %v2382 = vpack.c.b16 %v2256, %v2254
    %v2383 = vpack.c.b16 %v2257, %v2255
    %v2384 = vpack.c.b16 %v2260, %v2258
    %v2385 = vpack.c.b16 %v2261, %v2259
    %v2386 = vpack.c.b16 %v2264, %v2262
    %v2387 = vpack.c.b16 %v2265, %v2263
    %v2388 = vpack.c.b16 %v2268, %v2266
    %v2389 = vpack.c.b16 %v2269, %v2267
    %v2390 = vpack.c.b16 %v2272, %v2270
    %v2391 = vpack.c.b16 %v2273, %v2271
    %v2392 = vpack.c.b16 %v2276, %v2274
    %v2393 = vpack.c.b16 %v2277, %v2275
    %v2394 = vpack.c.b16 %v2280, %v2278
    %v2395 = vpack.c.b16 %v2281, %v2279
    %v2396 = vpack.c.b16 %v2284, %v2282
    %v2397 = vpack.c.b16 %v2285, %v2283
    %v2398 = vpack.c.b16 %v2288, %v2286
    %v2399 = vpack.c.b16 %v2289, %v2287
    %v2400 = vpack.c.b16 %v2292, %v2290
    %v2401 = vpack.c.b16 %v2293, %v2291
    %v2402 = vpack.c.b16 %v2296, %v2294
    %v2403 = vpack.c.b16 %v2297, %v2295
    %v2404 = vpack.c.b16 %v2300, %v2298
    %v2405 = vpack.c.b16 %v2301, %v2299
    %v2406 = vpack.c.b16 %v2304, %v2302
    %v2407 = vpack.c.b16 %v2305, %v2303
    %v2408 = vpack.c.b16 %v2308, %v2306
    %v2409 = vpack.c.b16 %v2309, %v2307
    %v2410 = vpack.c.b16 %v2312, %v2310
    %v2411 = vpack.c.b16 %v2313, %v2311
    %v2412 = vpack.c.b16 %v2316, %v2314
    %v2413 = vpack.c.b16 %v2317, %v2315
    %v2414 = vpack.c.b16 %v2320, %v2318
    %v2415 = vpack.c.b16 %v2321, %v2319
    %v2416 = vpack.c.b16 %v2324, %v2322
    %v2417 = vpack.c.b16 %v2325, %v2323
    %v2418 = vpack.c.b16 %v2328, %v2326
    %v2419 = vpack.c.b16 %v2329, %v2327
    %v2420 = vpack.c.b16 %v2332, %v2330
    %v2421 = vpack.c.b16 %v2333, %v2331
    %v2422 = vpack.c.b16 %v2336, %v2334
    %v2423 = vpack.c.b16 %v2337, %v2335
    %v2424 = vpack.c.b16 %v2340, %v2338
    %v2425 = vpack.c.b16 %v2341, %v2339
    %v2426 = vpack.c.b16 %v2344, %v2342
    %v2427 = vpack.c.b16 %v2345, %v2343
    %v2428 = vpack.c.b16 %v2348, %v2346
    %v2429 = vpack.c.b16 %v2349, %v2347
    %v2430 = vpack.c.b16 %v2352, %v2350
    %v2431 = vpack.c.b16 %v2353, %v2351
    %v2432 = vpack.c.b16 %v2356, %v2354
    %v2433 = vpack.c.b16 %v2357, %v2355
    %v2434 = vpack.c.b16 %v2360, %v2358
    %v2435 = vpack.c.b16 %v2361, %v2359
    %v2436 = vpack.c.b16 %v2364, %v2362
    %v2437 = vpack.c.b16 %v2365, %v2363
    %v2438 = vpack.c.b16 %v2368, %v2366
    %v2439 = vpack.c.b16 %v2369, %v2367
    %v2440 = vpack.c.b16 %v2372, %v2370
    %v2441 = vpack.c.b16 %v2373, %v2371
    %v2442 = vpack.c.b16 %v2376, %v2374
    %v2443 = vpack.c.b16 %v2377, %v2375
    %v2444 = vpack.c.b16 %v2380, %v2378
    %v2445 = vpack.c.b16 %v2381, %v2379
    %2510 = vmatpush.bf16.msra.mxu0 %v2396
    %2511 = vmatpush.bf16.msra.mxu0 %v2394
    %2512 = vmatpush.bf16.msra.mxu0 %v2392
    %2513 = vmatpush.bf16.msra.mxu0 %v2390
    %2514 = vmatpush.bf16.msra.mxu0 %v2388
    %2515 = vmatpush.bf16.msra.mxu0 %v2386
    %2516 = vmatpush.bf16.msra.mxu0 %v2384
    %2517 = vmatpush.bf16.msra.mxu0 %v2382
    %2518 = vmatmul.bf16.gmra.mxu0 %v2116
    %v2519 = vpop.f32.mrf.mxu0
    %v2520 = vadd.f32 %v2186, %v2519
    %v2521 = vpop.f32.mrf.mxu0
    %2522 = vdwg.mxu0
    %2523 = vmatpush.bf16.msra.mxu0 %v2412
    %2524 = vmatpush.bf16.msra.mxu0 %v2410
    %2525 = vmatpush.bf16.msra.mxu0 %v2408
    %2526 = vmatpush.bf16.msra.mxu0 %v2406
    %2527 = vmatpush.bf16.msra.mxu0 %v2404
    %2528 = vmatpush.bf16.msra.mxu0 %v2402
    %2529 = vmatpush.bf16.msra.mxu0 %v2400
    %2530 = vmatpush.bf16.msra.mxu0 %v2398
    %2531 = vmatmul.bf16.gmra.mxu0 %v2117
    %v2532 = vpop.f32.mrf.mxu0
    %v2533 = vadd.f32 %v2520, %v2532
    %v2534 = vpop.f32.mrf.mxu0
    %2535 = vdwg.mxu0
    %2536 = vmatpush.bf16.msra.mxu0 %v2428
    %2537 = vmatpush.bf16.msra.mxu0 %v2426
    %2538 = vmatpush.bf16.msra.mxu0 %v2424
    %2539 = vmatpush.bf16.msra.mxu0 %v2422
    %2540 = vmatpush.bf16.msra.mxu0 %v2420
    %2541 = vmatpush.bf16.msra.mxu0 %v2418
    %2542 = vmatpush.bf16.msra.mxu0 %v2416
    %2543 = vmatpush.bf16.msra.mxu0 %v2414
    %2544 = vmatmul.bf16.gmra.mxu0 %v2118
    %v2545 = vpop.f32.mrf.mxu0
    %v2546 = vadd.f32 %v2533, %v2545
    %v2547 = vpop.f32.mrf.mxu0
    %2548 = vdwg.mxu0
    %2549 = vmatpush.bf16.msra.mxu0 %v2444
    %2550 = vmatpush.bf16.msra.mxu0 %v2442
    %2551 = vmatpush.bf16.msra.mxu0 %v2440
    %2552 = vmatpush.bf16.msra.mxu0 %v2438
    %2553 = vmatpush.bf16.msra.mxu0 %v2436
    %2554 = vmatpush.bf16.msra.mxu0 %v2434
    %2555 = vmatpush.bf16.msra.mxu0 %v2432
    %2556 = vmatpush.bf16.msra.mxu0 %v2430
    %2557 = vmatmul.bf16.gmra.mxu0 %v2119
    %v2558 = vpop.f32.mrf.mxu0
    %v2559 = vadd.f32 %v2546, %v2558
    %v2560 = vpop.f32.mrf.mxu0
    %2561 = vdwg.mxu0
    %2562 = vmatpush.bf16.msra.mxu0 %v2397
    %2563 = vmatpush.bf16.msra.mxu0 %v2395
    %2564 = vmatpush.bf16.msra.mxu0 %v2393
    %2565 = vmatpush.bf16.msra.mxu0 %v2391
    %2566 = vmatpush.bf16.msra.mxu0 %v2389
    %2567 = vmatpush.bf16.msra.mxu0 %v2387
    %2568 = vmatpush.bf16.msra.mxu0 %v2385
    %2569 = vmatpush.bf16.msra.mxu0 %v2383
    %2570 = vmatmul.bf16.gmra.mxu0 %v2116
    %v2571 = vpop.f32.mrf.mxu0
    %v2572 = vadd.f32 %v2187, %v2571
    %v2573 = vpop.f32.mrf.mxu0
    %2574 = vdwg.mxu0
    %2575 = vmatpush.bf16.msra.mxu0 %v2413
    %2576 = vmatpush.bf16.msra.mxu0 %v2411
    %2577 = vmatpush.bf16.msra.mxu0 %v2409
    %2578 = vmatpush.bf16.msra.mxu0 %v2407
    %2579 = vmatpush.bf16.msra.mxu0 %v2405
    %2580 = vmatpush.bf16.msra.mxu0 %v2403
    %2581 = vmatpush.bf16.msra.mxu0 %v2401
    %2582 = vmatpush.bf16.msra.mxu0 %v2399
    %2583 = vmatmul.bf16.gmra.mxu0 %v2117
    %v2584 = vpop.f32.mrf.mxu0
    %v2585 = vadd.f32 %v2572, %v2584
    %v2586 = vpop.f32.mrf.mxu0
    %2587 = vdwg.mxu0
    %2588 = vmatpush.bf16.msra.mxu0 %v2429
    %2589 = vmatpush.bf16.msra.mxu0 %v2427
    %2590 = vmatpush.bf16.msra.mxu0 %v2425
    %2591 = vmatpush.bf16.msra.mxu0 %v2423
    %2592 = vmatpush.bf16.msra.mxu0 %v2421
    %2593 = vmatpush.bf16.msra.mxu0 %v2419
    %2594 = vmatpush.bf16.msra.mxu0 %v2417
    %2595 = vmatpush.bf16.msra.mxu0 %v2415
    %2596 = vmatmul.bf16.gmra.mxu0 %v2118
    %v2597 = vpop.f32.mrf.mxu0
    %v2598 = vadd.f32 %v2585, %v2597
    %v2599 = vpop.f32.mrf.mxu0
    %2600 = vdwg.mxu0
    %2601 = vmatpush.bf16.msra.mxu0 %v2445
    %2602 = vmatpush.bf16.msra.mxu0 %v2443
    %2603 = vmatpush.bf16.msra.mxu0 %v2441
    %2604 = vmatpush.bf16.msra.mxu0 %v2439
    %2605 = vmatpush.bf16.msra.mxu0 %v2437
    %2606 = vmatpush.bf16.msra.mxu0 %v2435
    %2607 = vmatpush.bf16.msra.mxu0 %v2433
    %2608 = vmatpush.bf16.msra.mxu0 %v2431
    %2609 = vmatmul.bf16.gmra.mxu0 %v2119
    %v2610 = vpop.f32.mrf.mxu0
    %v2611 = vadd.f32 %v2598, %v2610
    %v2612 = vpop.f32.mrf.mxu0
    %2613 = vdwg.mxu0
    %v2614 = vmax.f32 %v2559, 0.0
    %v2615 = vmax.f32 %v2611, 0.0
    %v2616 = vpack.c.bf16 %v2614, %v2614
    %v2617 = vpack.c.bf16 %v2615, %v2615
    %v2618 = vld [vmem:[%s6] sm:$0xf]
    %v2619 = vld [vmem:[%s6 + $0x4] sm:$0xf]
    %v2620 = vld [vmem:[%s6 + $0x8] sm:$0xf]
    %v2621 = vld [vmem:[%s6 + $0xc] sm:$0xf]
    %v2622 = vld [vmem:[%s6 + $0x10] sm:$0xf]
    %v2623 = vld [vmem:[%s6 + $0x14] sm:$0xf]
    %v2624 = vld [vmem:[%s6 + $0x18] sm:$0xf]
    %v2625 = vld [vmem:[%s6 + $0x1c] sm:$0xf]
    %v2626 = vld [vmem:[%s6 + $0x20] sm:$0xf]
    %v2627 = vld [vmem:[%s6 + $0x24] sm:$0xf]
    %v2628 = vld [vmem:[%s6 + $0x28] sm:$0xf]
    %v2629 = vld [vmem:[%s6 + $0x2c] sm:$0xf]
    %v2630 = vld [vmem:[%s6 + $0x30] sm:$0xf]
    %v2631 = vld [vmem:[%s6 + $0x34] sm:$0xf]
    %v2632 = vld [vmem:[%s6 + $0x38] sm:$0xf]
    %v2633 = vld [vmem:[%s6 + $0x3c] sm:$0xf]
    %v2634 = vld [vmem:[%s6 + $0x40] sm:$0xf]
    %v2635 = vld [vmem:[%s6 + $0x44] sm:$0xf]
    %v2636 = vld [vmem:[%s6 + $0x48] sm:$0xf]
    %v2637 = vld [vmem:[%s6 + $0x4c] sm:$0xf]
    %v2638 = vld [vmem:[%s6 + $0x50] sm:$0xf]
    %v2639 = vld [vmem:[%s6 + $0x54] sm:$0xf]
    %v2640 = vld [vmem:[%s6 + $0x58] sm:$0xf]
    %v2641 = vld [vmem:[%s6 + $0x5c] sm:$0xf]
    %v2642 = vld [vmem:[%s6 + $0x60] sm:$0xf]
    %v2643 = vld [vmem:[%s6 + $0x64] sm:$0xf]
    %v2644 = vld [vmem:[%s6 + $0x68] sm:$0xf]
    %v2645 = vld [vmem:[%s6 + $0x6c] sm:$0xf]
    %v2646 = vld [vmem:[%s6 + $0x70] sm:$0xf]
    %v2647 = vld [vmem:[%s6 + $0x74] sm:$0xf]
    %v2648 = vld [vmem:[%s6 + $0x78] sm:$0xf]
    %v2649 = vld [vmem:[%s6 + $0x7c] sm:$0xf]
    %v2650 = vld [vmem:[%s7] sm:$0x1]
    %v2652 = vperm.slane %v2650, 0
    %v2686 = vunpack.c.l.b16 %v2618
    %v2687 = vunpack.c.l.b16 %v2619
    %v2688 = vunpack.c.l.b16 %v2620
    %v2689 = vunpack.c.l.b16 %v2621
    %v2690 = vunpack.c.l.b16 %v2622
    %v2691 = vunpack.c.l.b16 %v2623
    %v2692 = vunpack.c.l.b16 %v2624
    %v2693 = vunpack.c.l.b16 %v2625
    %v2694 = vunpack.c.l.b16 %v2626
    %v2695 = vunpack.c.l.b16 %v2627
    %v2696 = vunpack.c.l.b16 %v2628
    %v2697 = vunpack.c.l.b16 %v2629
    %v2698 = vunpack.c.l.b16 %v2630
    %v2699 = vunpack.c.l.b16 %v2631
    %v2700 = vunpack.c.l.b16 %v2632
    %v2701 = vunpack.c.l.b16 %v2633
    %v2702 = vunpack.c.l.b16 %v2634
    %v2703 = vunpack.c.l.b16 %v2635
    %v2704 = vunpack.c.l.b16 %v2636
    %v2705 = vunpack.c.l.b16 %v2637
    %v2706 = vunpack.c.l.b16 %v2638
    %v2707 = vunpack.c.l.b16 %v2639
    %v2708 = vunpack.c.l.b16 %v2640
    %v2709 = vunpack.c.l.b16 %v2641
    %v2710 = vunpack.c.l.b16 %v2642
    %v2711 = vunpack.c.l.b16 %v2643
    %v2712 = vunpack.c.l.b16 %v2644
    %v2713 = vunpack.c.l.b16 %v2645
    %v2714 = vunpack.c.l.b16 %v2646
    %v2715 = vunpack.c.l.b16 %v2647
    %v2716 = vunpack.c.l.b16 %v2648
    %v2717 = vunpack.c.l.b16 %v2649
    %v2718 = vpack.c.b16 %v2687, %v2686
    %v2719 = vpack.c.b16 %v2689, %v2688
    %v2720 = vpack.c.b16 %v2691, %v2690
    %v2721 = vpack.c.b16 %v2693, %v2692
    %v2722 = vpack.c.b16 %v2695, %v2694
    %v2723 = vpack.c.b16 %v2697, %v2696
    %v2724 = vpack.c.b16 %v2699, %v2698
    %v2725 = vpack.c.b16 %v2701, %v2700
    %v2726 = vpack.c.b16 %v2703, %v2702
    %v2727 = vpack.c.b16 %v2705, %v2704
    %v2728 = vpack.c.b16 %v2707, %v2706
    %v2729 = vpack.c.b16 %v2709, %v2708
    %v2730 = vpack.c.b16 %v2711, %v2710
    %v2731 = vpack.c.b16 %v2713, %v2712
    %v2732 = vpack.c.b16 %v2715, %v2714
    %v2733 = vpack.c.b16 %v2717, %v2716
    %2750 = vmatpush.bf16.msra.mxu0 %v2725
    %2751 = vmatpush.bf16.msra.mxu0 %v2724
    %2752 = vmatpush.bf16.msra.mxu0 %v2723
    %2753 = vmatpush.bf16.msra.mxu0 %v2722
    %2754 = vmatpush.bf16.msra.mxu0 %v2721
    %2755 = vmatpush.bf16.msra.mxu0 %v2720
    %2756 = vmatpush.bf16.msra.mxu0 %v2719
    %2757 = vmatpush.bf16.msra.mxu0 %v2718
    %2758 = vmatmul.bf16.gmra.mxu0 %v2616
    %v2759 = vpop.f32.mrf.mxu0
    %v2760 = vadd.f32 %v2652, %v2759
    %v2761 = vpop.f32.mrf.mxu0
    %2762 = vdwg.mxu0
    %2763 = vmatpush.bf16.msra.mxu0 %v2733
    %2764 = vmatpush.bf16.msra.mxu0 %v2732
    %2765 = vmatpush.bf16.msra.mxu0 %v2731
    %2766 = vmatpush.bf16.msra.mxu0 %v2730
    %2767 = vmatpush.bf16.msra.mxu0 %v2729
    %2768 = vmatpush.bf16.msra.mxu0 %v2728
    %2769 = vmatpush.bf16.msra.mxu0 %v2727
    %2770 = vmatpush.bf16.msra.mxu0 %v2726
    %2771 = vmatmul.bf16.gmra.mxu0 %v2617
    %v2772 = vpop.f32.mrf.mxu0
    %v2773 = vadd.f32 %v2760, %v2772
    %v2774 = vpop.f32.mrf.mxu0
    %2775 = vdwg.mxu0
    %v2776 = vmax.f32 %v2773, 0.0
    %v2777 = vld [vmem:[%s1] sm:$0x3f]
    %v2778 = vpack.c.bf16 %v2776, %v2776
    %v2779 = vld [vmem:[%s8] sm:$0xf]
    %v2780 = vld [vmem:[%s8 + $0x4] sm:$0xf]
    %v2781 = vld [vmem:[%s8 + $0x8] sm:$0xf]
    %v2782 = vld [vmem:[%s8 + $0xc] sm:$0xf]
    %v2783 = vpack.c.bf16 %v2777, %v2777
    %v2784 = vld [vmem:[%s8 + $0x10] sm:$0xf]
    %v2785 = vld [vmem:[%s8 + $0x14] sm:$0xf]
    %v2786 = vld [vmem:[%s8 + $0x18] sm:$0xf]
    %v2787 = vld [vmem:[%s8 + $0x1c] sm:$0xf]
    %v2792 = vunpack.c.l.b16 %v2784
    %v2793 = vunpack.c.l.b16 %v2785
    %v2794 = vunpack.c.l.b16 %v2786
    %v2795 = vunpack.c.l.b16 %v2787
    %v2796 = vpack.c.b16 %v2793, %v2792
    %v2797 = vpack.c.b16 %v2795, %v2794
    %vm2800 = vcmask 261120
    %v2802 = vsel %vm2800, %v2783, 0
    %2804 = vmatpush.bf16.msra.mxu0 0
    %2805 = vmatpush.bf16.msra.mxu0 0
    %2806 = vmatpush.bf16.msra.mxu0 0
    %2807 = vmatpush.bf16.msra.mxu0 0
    %2808 = vmatpush.bf16.msra.mxu0 0
    %2809 = vmatpush.bf16.msra.mxu0 0
    %2810 = vmatpush.bf16.msra.mxu0 %v2797
    %2811 = vmatpush.bf16.msra.mxu0 %v2796
    %2812 = vmatmul.bf16.gmra.mxu0 %v2802
    %v2813 = vpop.f32.mrf.mxu0
    %v2814 = vadd.f32 0.0, %v2813
    %v2815 = vpop.f32.mrf.mxu0
    %2816 = vdwg.mxu0
    %v2821 = vunpack.c.l.b16 %v2779
    %v2822 = vunpack.c.l.b16 %v2780
    %v2823 = vunpack.c.l.b16 %v2781
    %v2824 = vunpack.c.l.b16 %v2782
    %v2825 = vpack.c.b16 %v2822, %v2821
    %v2826 = vpack.c.b16 %v2824, %v2823
    %v2830 = vsel %vm2800, %v2778, 0
    %2832 = vmatpush.bf16.msra.mxu0 0
    %2833 = vmatpush.bf16.msra.mxu0 0
    %2834 = vmatpush.bf16.msra.mxu0 0
    %2835 = vmatpush.bf16.msra.mxu0 0
    %2836 = vmatpush.bf16.msra.mxu0 0
    %2837 = vmatpush.bf16.msra.mxu0 0
    %2838 = vmatpush.bf16.msra.mxu0 %v2826
    %2839 = vmatpush.bf16.msra.mxu0 %v2825
    %2840 = vmatmul.bf16.gmra.mxu0 %v2830
    %v2841 = vpop.f32.mrf.mxu0
    %v2842 = vadd.f32 %v2814, %v2841
    %v2843 = vpop.f32.mrf.mxu0
    %2844 = vdwg.mxu0
    %v2845 = vld [vmem:[%s9] sm:$0x1]
    %v2847 = vperm.slane %v2845, 0
    %v2849 = vadd.f32 %v2842, %v2847
    %v2850 = vtanh.pop %v2849
    %vm2851 = vcmask 259072
    %2852 = vst.msk [vmem:[%s10] sm:$0x3f] %vm2851, %v2850
    // Predicated region
    $region46: #{forward.1} parent=1 // pred_check
      _
    $region47: #{forward.1} parent=1 // pred_check_branch
      %2854 = sbr.rel (0) target = $region49
    $region48: #{forward.1} parent=1 // pred_region
      _
    $region49: #{forward.1} parent=1 // pred_fallthru
      _
    // Predicated region
    $region50: #{forward.1} parent=1 // pred_check
      _
    $region51: #{forward.1} parent=1 // pred_check_branch
      %2856 = sbr.rel (0) target = $region53
    $region52: #{forward.1} parent=1 // pred_region
      _
    $region53: #{forward.1} parent=1 // pred_fallthru
      _
    %2857 = vsyncpa [#allocation3], 1

</llo_original>
